<compile_context>
chip_gen: v7x
topology: tpu7x:2x2x1
jax: 0.10.0
libtpu: 0.0.40
codegen_flags: <defaults>
</compile_context>

<pallas_src>
import math

import jax
import jax.numpy as jnp
from jax.experimental import pallas as pl
from jax.experimental.pallas import tpu as pltpu


# ----------------------------------------------------------------------------
# Fused kernel body (one grid step = Nb full images)
# ----------------------------------------------------------------------------

def _fused_block_kernel(x_ref,
                        w12_ref, s12_ref, b12_ref,
                        w13_ref, s13_ref, b13_ref,
                        w31_ref, s31_ref, b31_ref,
                        wl1_ref, sl_ref, bl_ref,
                        wse1_ref, wse2_ref,
                        o_ref):
    # x_ref : (Nb, H, W, Cin) f32        o_ref : (Nb, H, W, Cin) f32
    # w12   : (Cin, 2*Cb) bf16 ; s12/b12: (1, 2*Cb) f32
    # w13/w31: (3*Cb, Cb) bf16 (tap-major) ; s/b: (1, Cb) f32
    # wl1   : (2*Cb, Cin) bf16 ; sl/bl  : (1, Cin) f32
    # wse1  : (Cin, Cr) bf16  ; wse2   : (Cr, Cin) bf16
    Nb, H, W, Cin = x_ref.shape
    Cb2 = w12_ref.shape[1]
    Cb = Cb2 // 2
    M = Nb * H * W

    xv = x_ref[...]                                      # read x ONCE (f32)
    xb = xv.reshape(M, Cin).astype(jnp.bfloat16)

    # ---- Stage 1: both branch 1x1 stems in one lane-dense matmul (N = 2*Cb).
    a = jnp.dot(xb, w12_ref[...], preferred_element_type=jnp.float32)
    m12 = jnp.maximum(a * s12_ref[...] + b12_ref[...], 0.0)
    m1 = m12[:, :Cb].astype(jnp.bfloat16)                # branch 1      (M, Cb)
    t = m12[:, Cb:].astype(jnp.bfloat16).reshape(Nb, H, W, Cb)  # m2 stem

    # ---- Stage 2: (1,3) conv along W -> BN -> ReLU.
    # Shifted bf16 input stack, single K = 3*Cb matmul (taps: w-1, w, w+1).
    zc = jnp.zeros((Nb, H, 1, Cb), jnp.bfloat16)
    stack_w = jnp.concatenate(
        [jnp.concatenate([zc, t[:, :, :-1, :]], axis=2),       # in[w-1]
         t,                                                     # in[w]
         jnp.concatenate([t[:, :, 1:, :], zc], axis=2)],        # in[w+1]
        axis=-1).reshape(M, 3 * Cb)
    c1 = jnp.dot(stack_w, w13_ref[...], preferred_element_type=jnp.float32)
    t = jnp.maximum(c1 * s13_ref[...] + b13_ref[...], 0.0).astype(jnp.bfloat16)
    t = t.reshape(Nb, H, W, Cb)

    # ---- Stage 3: (3,1) conv along H -> BN -> ReLU (taps: h-1, h, h+1).
    zr = jnp.zeros((Nb, 1, W, Cb), jnp.bfloat16)
    stack_h = jnp.concatenate(
        [jnp.concatenate([zr, t[:, :-1, :, :]], axis=1),        # in[h-1]
         t,                                                      # in[h]
         jnp.concatenate([t[:, 1:, :, :], zr], axis=1)],         # in[h+1]
        axis=-1).reshape(M, 3 * Cb)
    c2 = jnp.dot(stack_h, w31_ref[...], preferred_element_type=jnp.float32)
    m2f = jnp.maximum(c2 * s31_ref[...] + b31_ref[...], 0.0).astype(jnp.bfloat16)

    # ---- Stage 4: implicit channel concat + l1 1x1 (single K = 2*Cb), BN only.
    cat = jnp.concatenate([m1, m2f], axis=-1)            # (M, 2*Cb) bf16, VMEM
    z = jnp.dot(cat, wl1_ref[...], preferred_element_type=jnp.float32)
    z = z * sl_ref[...] + bl_ref[...]                     # (M, Cin) f32

    # ---- Stage 5: SE gate — per-image global mean over H*W, two bias-free FCs.
    z3 = z.reshape(Nb, H * W, Cin)
    mean = jnp.mean(z3, axis=1)                           # (Nb, Cin) f32
    h1 = jnp.maximum(
        jnp.dot(mean.astype(jnp.bfloat16), wse1_ref[...],
                preferred_element_type=jnp.float32), 0.0)
    g = jnp.dot(h1.astype(jnp.bfloat16), wse2_ref[...],
                preferred_element_type=jnp.float32)
    gate = 1.0 / (1.0 + jnp.exp(-g))                      # sigmoid, (Nb, Cin)

    # ---- Stage 6: SE scale + residual add (f32) + final ReLU.
    out = jnp.maximum(z3 * gate[:, None, :] + xv.reshape(Nb, H * W, Cin), 0.0)
    o_ref[...] = out.reshape(Nb, H, W, Cin).astype(o_ref.dtype)


# ----------------------------------------------------------------------------
# pallas_call wrapper (NHWC)
# ----------------------------------------------------------------------------

def _pick_batch_tile(n, hw, target_m=256):
    """Batch-tile Nb: fold batch into M >= target_m while keeping >= 2 grid
    steps when N >= 2 (so both v7x TensorCores get work)."""
    if n <= 1:
        return 1
    cands = [d for d in range(1, n) if n % d == 0 and n // d >= 2]
    for d in cands:
        if d * hw >= target_m:
            return d
    return cands[-1]


def inception_resnet_c_nhwc(x, p):
    N, H, W, Cin = x.shape
    Cb = p["m1"]["w"].shape[1]
    Cr = p["se"]["w1"].shape[1]
    HW = H * W
    Nb = _pick_batch_tile(N, HW)
    steps = N // Nb

    # Weight prep (XLA-side, once): concat stems / l1 halves, flatten conv taps.
    w12 = jnp.concatenate([p["m1"]["w"], p["m2a"]["w"]], axis=1)       # (Cin, 2Cb)
    s12 = jnp.concatenate([p["m1"]["scale"], p["m2a"]["scale"]], axis=1)
    b12 = jnp.concatenate([p["m1"]["bias"], p["m2a"]["bias"]], axis=1)
    w13 = p["m2b"]["w"].reshape(3 * Cb, Cb)                            # tap-major
    w31 = p["m2c"]["w"].reshape(3 * Cb, Cb)
    wl1 = jnp.concatenate([p["l1"]["wa"], p["l1"]["wb"]], axis=0)      # (2Cb, Cin)

    c2 = lambda i: (0, 0)   # resident (constant-index) 2-D operands

    out = pl.pallas_call(
        _fused_block_kernel,
        out_shape=jax.ShapeDtypeStruct((N, H, W, Cin), x.dtype),
        grid=(steps,),
        in_specs=[
            pl.BlockSpec((Nb, H, W, Cin), lambda i: (i, 0, 0, 0)),
            pl.BlockSpec((Cin, 2 * Cb), c2),
            pl.BlockSpec((1, 2 * Cb), c2),
            pl.BlockSpec((1, 2 * Cb), c2),
            pl.BlockSpec((3 * Cb, Cb), c2),
            pl.BlockSpec((1, Cb), c2),
            pl.BlockSpec((1, Cb), c2),
            pl.BlockSpec((3 * Cb, Cb), c2),
            pl.BlockSpec((1, Cb), c2),
            pl.BlockSpec((1, Cb), c2),
            pl.BlockSpec((2 * Cb, Cin), c2),
            pl.BlockSpec((1, Cin), c2),
            pl.BlockSpec((1, Cin), c2),
            pl.BlockSpec((Cin, Cr), c2),
            pl.BlockSpec((Cr, Cin), c2),
        ],
        out_specs=pl.BlockSpec((Nb, H, W, Cin), lambda i: (i, 0, 0, 0)),
        compiler_params=pltpu.CompilerParams(
            dimension_semantics=("parallel",)),
    )(x, w12, s12, b12,
      w13, p["m2b"]["scale"], p["m2b"]["bias"],
      w31, p["m2c"]["scale"], p["m2c"]["bias"],
      wl1, p["l1"]["scale"], p["l1"]["bias"],
      p["se"]["w1"], p["se"]["w2"])
    return out


def inception_resnet_c(x_nchw, p):
    # NCHW interface to match the PyTorch module; in a full NHWC network these
    # boundary transposes disappear.
    x = jnp.transpose(x_nchw, (0, 2, 3, 1))
    y = inception_resnet_c_nhwc(x, p)
    return jnp.transpose(y, (0, 3, 1, 2))


# ----------------------------------------------------------------------------
# Deterministic parameter construction (conv weights + folded BatchNorm)
# ----------------------------------------------------------------------------

def _bn_fold(key, c, eps=1e-5):
    k1, k2, k3, k4 = jax.random.split(key, 4)
    gamma = 1.0 + 0.1 * jax.random.normal(k1, (c,), jnp.float32)
    beta = 0.1 * jax.random.normal(k2, (c,), jnp.float32)
    mean = 0.1 * jax.random.normal(k3, (c,), jnp.float32)
    var = 1.0 + 0.5 * jax.random.uniform(k4, (c,), jnp.float32)
    scale = gamma * jax.lax.rsqrt(var + eps)
    bias = beta - mean * scale
    return scale.reshape(1, c), bias.reshape(1, c)


def _conv_w(key, shape, fan_in):
    w = jax.random.normal(key, shape, jnp.float32) / math.sqrt(fan_in)
    return w.astype(jnp.bfloat16)


def init_inception_resnet_c_params(key, in_c, branch_c=192, reduction=16):
    c_r = max(in_c // reduction, 1)
    ks = jax.random.split(key, 12)
    p = {}
    s, b = _bn_fold(ks[1], branch_c)
    p["m1"] = {"w": _conv_w(ks[0], (in_c, branch_c), in_c), "scale": s, "bias": b}
    s, b = _bn_fold(ks[3], branch_c)
    p["m2a"] = {"w": _conv_w(ks[2], (in_c, branch_c), in_c), "scale": s, "bias": b}
    s, b = _bn_fold(ks[5], branch_c)
    p["m2b"] = {"w": _conv_w(ks[4], (3, branch_c, branch_c), 3 * branch_c),
                "scale": s, "bias": b}                      # (1,3) conv, kw-major
    s, b = _bn_fold(ks[7], branch_c)
    p["m2c"] = {"w": _conv_w(ks[6], (3, branch_c, branch_c), 3 * branch_c),
                "scale": s, "bias": b}                      # (3,1) conv, kh-major
    s, b = _bn_fold(ks[9], in_c)
    wl1 = _conv_w(ks[8], (2 * branch_c, in_c), 2 * branch_c)
    p["l1"] = {"wa": wl1[:branch_c], "wb": wl1[branch_c:], "scale": s, "bias": b}
    p["se"] = {"w1": _conv_w(ks[10], (in_c, c_r), in_c),
               "w2": _conv_w(ks[11], (c_r, in_c), c_r)}
    return p


# ----------------------------------------------------------------------------
# Pure-JAX reference (f32 math with the same bf16-rounded weights)
# ----------------------------------------------------------------------------

def inception_resnet_c_reference(x_nchw, p):
    f32 = lambda a: a.astype(jnp.float32)
    x = jnp.transpose(x_nchw, (0, 2, 3, 1)).astype(jnp.float32)
    Cb = p["m1"]["w"].shape[1]
    dn = ("NHWC", "HWIO", "NHWC")

    def cba1(z, w, s, b, act=True):
        y = jnp.einsum("nhwc,cd->nhwd", z, f32(w)) * s + b
        return jnp.maximum(y, 0.0) if act else y

    m1 = cba1(x, p["m1"]["w"], p["m1"]["scale"], p["m1"]["bias"])
    m2 = cba1(x, p["m2a"]["w"], p["m2a"]["scale"], p["m2a"]["bias"])
    w13 = f32(p["m2b"]["w"]).reshape(1, 3, Cb, Cb)
    t = jax.lax.conv_general_dilated(m2, w13, (1, 1), [(0, 0), (1, 1)],
                                     dimension_numbers=dn)
    t = jnp.maximum(t * p["m2b"]["scale"] + p["m2b"]["bias"], 0.0)
    w31 = f32(p["m2c"]["w"]).reshape(3, 1, Cb, Cb)
    t = jax.lax.conv_general_dilated(t, w31, (1, 1), [(1, 1), (0, 0)],
                                     dimension_numbers=dn)
    m2f = jnp.maximum(t * p["m2c"]["scale"] + p["m2c"]["bias"], 0.0)

    cat = jnp.concatenate([m1, m2f], axis=-1)
    wl1 = jnp.concatenate([f32(p["l1"]["wa"]), f32(p["l1"]["wb"])], axis=0)
    z = jnp.einsum("nhwc,cd->nhwd", cat, wl1) * p["l1"]["scale"] + p["l1"]["bias"]

    mean = z.mean(axis=(1, 2))                              # (N, Cin)
    h = jnp.maximum(mean @ f32(p["se"]["w1"]), 0.0)
    gate = jax.nn.sigmoid(h @ f32(p["se"]["w2"]))
    out = jnp.maximum(z * gate[:, None, None, :] + x, 0.0)
    return jnp.transpose(out, (0, 3, 1, 2))


# ----------------------------------------------------------------------------
# Main
# ----------------------------------------------------------------------------

if __name__ == "__main__":
    key = jax.random.PRNGKey(0)
    kx, kp = jax.random.split(key)

    # Small shapes consistent with the module (real module: in_c=1792, branch=192).
    N, C, H, W = 2, 128, 16, 16
    branch_c, reduction = 64, 16

    x = jax.random.normal(kx, (N, C, H, W), dtype=jnp.float32)
    params = init_inception_resnet_c_params(kp, in_c=C, branch_c=branch_c,
                                            reduction=reduction)

    y = inception_resnet_c(x, params)
    y = jax.block_until_ready(y)
    assert y.shape == (N, C, H, W), y.shape

    y_ref = inception_resnet_c_reference(x, params)
    max_err = float(jnp.max(jnp.abs(y - y_ref)))
    # bf16 matmul operands / bf16 intermediates vs f32-intermediate reference.
    if not bool(jnp.allclose(y, y_ref, atol=1e-1, rtol=1e-1)):
        raise AssertionError(f"Pallas InceptionResnetC mismatch, max abs err={max_err}")

    print("KERNEL_OK")
</pallas_src>

<mosaic_0001>
module attributes {stable_mosaic.version = 11 : i64} {
  func.func @_fused_block_kernel(%arg0: i32, %arg1: memref<1x16x16x128xf32, #tpu.memory_space<vmem>>, %arg2: memref<128x128xbf16, #tpu.memory_space<vmem>>, %arg3: memref<1x128xf32, #tpu.memory_space<vmem>>, %arg4: memref<1x128xf32, #tpu.memory_space<vmem>>, %arg5: memref<192x64xbf16, #tpu.memory_space<vmem>>, %arg6: memref<1x64xf32, #tpu.memory_space<vmem>>, %arg7: memref<1x64xf32, #tpu.memory_space<vmem>>, %arg8: memref<192x64xbf16, #tpu.memory_space<vmem>>, %arg9: memref<1x64xf32, #tpu.memory_space<vmem>>, %arg10: memref<1x64xf32, #tpu.memory_space<vmem>>, %arg11: memref<128x128xbf16, #tpu.memory_space<vmem>>, %arg12: memref<1x128xf32, #tpu.memory_space<vmem>>, %arg13: memref<1x128xf32, #tpu.memory_space<vmem>>, %arg14: memref<128x8xbf16, #tpu.memory_space<vmem>>, %arg15: memref<8x128xbf16, #tpu.memory_space<vmem>>, %arg16: memref<1x16x16x128xf32, #tpu.memory_space<vmem>>) attributes {dimension_semantics = [#tpu.dimension_semantics<parallel>], iteration_bounds = array<i64: 2>, scalar_prefetch = 0 : i64, scratch_operands = 0 : i64, tpu.core_type = #tpu.core_type<tc>, window_params = [{transform_indices = @transform_0, window_bounds = array<i64: 1, 16, 16, 128>}, {pipeline_mode = #tpu.pipeline_mode<synchronous>, transform_indices = @transform_1, window_bounds = array<i64: 128, 128>}, {pipeline_mode = #tpu.pipeline_mode<synchronous>, transform_indices = @transform_2, window_bounds = array<i64: 1, 128>}, {pipeline_mode = #tpu.pipeline_mode<synchronous>, transform_indices = @transform_3, window_bounds = array<i64: 1, 128>}, {pipeline_mode = #tpu.pipeline_mode<synchronous>, transform_indices = @transform_4, window_bounds = array<i64: 192, 64>}, {pipeline_mode = #tpu.pipeline_mode<synchronous>, transform_indices = @transform_5, window_bounds = array<i64: 1, 64>}, {pipeline_mode = #tpu.pipeline_mode<synchronous>, transform_indices = @transform_6, window_bounds = array<i64: 1, 64>}, {pipeline_mode = #tpu.pipeline_mode<synchronous>, transform_indices = @transform_7, window_bounds = array<i64: 192, 64>}, {pipeline_mode = #tpu.pipeline_mode<synchronous>, transform_indices = @transform_8, window_bounds = array<i64: 1, 64>}, {pipeline_mode = #tpu.pipeline_mode<synchronous>, transform_indices = @transform_9, window_bounds = array<i64: 1, 64>}, {pipeline_mode = #tpu.pipeline_mode<synchronous>, transform_indices = @transform_10, window_bounds = array<i64: 128, 128>}, {pipeline_mode = #tpu.pipeline_mode<synchronous>, transform_indices = @transform_11, window_bounds = array<i64: 1, 128>}, {pipeline_mode = #tpu.pipeline_mode<synchronous>, transform_indices = @transform_12, window_bounds = array<i64: 1, 128>}, {pipeline_mode = #tpu.pipeline_mode<synchronous>, transform_indices = @transform_13, window_bounds = array<i64: 128, 8>}, {pipeline_mode = #tpu.pipeline_mode<synchronous>, transform_indices = @transform_14, window_bounds = array<i64: 8, 128>}, {transform_indices = @transform_15, window_bounds = array<i64: 1, 16, 16, 128>}]} {
    %c0 = arith.constant 0 : index
    %c0_0 = arith.constant 0 : index
    %c0_1 = arith.constant 0 : index
    %c0_2 = arith.constant 0 : index
    %0 = vector.load %arg1[%c0, %c0_0, %c0_1, %c0_2] : memref<1x16x16x128xf32, #tpu.memory_space<vmem>>, vector<1x16x16x128xf32>
    %1 = vector.shape_cast %0 : vector<1x16x16x128xf32> to vector<256x128xf32>
    %2 = arith.truncf %1 : vector<256x128xf32> to vector<256x128xbf16>
    %c0_3 = arith.constant 0 : index
    %c0_4 = arith.constant 0 : index
    %3 = vector.load %arg2[%c0_3, %c0_4] : memref<128x128xbf16, #tpu.memory_space<vmem>>, vector<128x128xbf16>
    %cst = arith.constant dense<0.000000e+00> : vector<256x128xf32>
    %4 = tpu.matmul %2, %3, %cst {dimension_numbers = #tpu.dot_dimension_numbers<[1], [0], [0], [1], [0, 0, 1, 1], [], []>} : vector<256x128xbf16>, vector<128x128xbf16>, vector<256x128xf32> -> vector<256x128xf32>
    %c0_5 = arith.constant 0 : index
    %c0_6 = arith.constant 0 : index
    %5 = vector.load %arg3[%c0_5, %c0_6] : memref<1x128xf32, #tpu.memory_space<vmem>>, vector<1x128xf32>
    %6 = vector.broadcast %5 : vector<1x128xf32> to vector<256x128xf32>
    %7 = arith.mulf %4, %6 : vector<256x128xf32>
    %c0_7 = arith.constant 0 : index
    %c0_8 = arith.constant 0 : index
    %8 = vector.load %arg4[%c0_7, %c0_8] : memref<1x128xf32, #tpu.memory_space<vmem>>, vector<1x128xf32>
    %9 = vector.broadcast %8 : vector<1x128xf32> to vector<256x128xf32>
    %10 = arith.addf %7, %9 : vector<256x128xf32>
    %cst_9 = arith.constant 0.000000e+00 : f32
    %11 = vector.broadcast %cst_9 : f32 to vector<256x128xf32>
    %12 = arith.maximumf %10, %11 : vector<256x128xf32>
    %13 = vector.extract_strided_slice %12 {offsets = [0, 0], sizes = [256, 64], strides = [1, 1]} : vector<256x128xf32> to vector<256x64xf32>
    %14 = arith.truncf %13 : vector<256x64xf32> to vector<256x64xbf16>
    %15 = vector.extract_strided_slice %12 {offsets = [0, 64], sizes = [256, 64], strides = [1, 1]} : vector<256x128xf32> to vector<256x64xf32>
    %16 = arith.truncf %15 : vector<256x64xf32> to vector<256x64xbf16>
    %17 = vector.shape_cast %16 : vector<256x64xbf16> to vector<1x16x16x64xbf16>
    %cst_10 = arith.constant 0.000000e+00 : bf16
    %18 = vector.broadcast %cst_10 : bf16 to vector<1x16x1x64xbf16>
    %19 = vector.extract_strided_slice %17 {offsets = [0, 0, 0, 0], sizes = [1, 16, 15, 64], strides = [1, 1, 1, 1]} : vector<1x16x16x64xbf16> to vector<1x16x15x64xbf16>
    %20 = tpu.concatenate %18, %19 in 2 : vector<1x16x1x64xbf16>, vector<1x16x15x64xbf16> -> vector<1x16x16x64xbf16>
    %21 = vector.extract_strided_slice %17 {offsets = [0, 0, 1, 0], sizes = [1, 16, 15, 64], strides = [1, 1, 1, 1]} : vector<1x16x16x64xbf16> to vector<1x16x15x64xbf16>
    %22 = tpu.concatenate %21, %18 in 2 : vector<1x16x15x64xbf16>, vector<1x16x1x64xbf16> -> vector<1x16x16x64xbf16>
    %23 = tpu.concatenate %20, %17, %22 in 3 : vector<1x16x16x64xbf16>, vector<1x16x16x64xbf16>, vector<1x16x16x64xbf16> -> vector<1x16x16x192xbf16>
    %24 = vector.shape_cast %23 : vector<1x16x16x192xbf16> to vector<256x192xbf16>
    %c0_11 = arith.constant 0 : index
    %c0_12 = arith.constant 0 : index
    %25 = vector.load %arg5[%c0_11, %c0_12] : memref<192x64xbf16, #tpu.memory_space<vmem>>, vector<192x64xbf16>
    %cst_13 = arith.constant dense<0.000000e+00> : vector<256x64xf32>
    %26 = tpu.matmul %24, %25, %cst_13 {dimension_numbers = #tpu.dot_dimension_numbers<[1], [0], [0], [1], [0, 0, 1, 1], [], []>} : vector<256x192xbf16>, vector<192x64xbf16>, vector<256x64xf32> -> vector<256x64xf32>
    %c0_14 = arith.constant 0 : index
    %c0_15 = arith.constant 0 : index
    %27 = vector.load %arg6[%c0_14, %c0_15] : memref<1x64xf32, #tpu.memory_space<vmem>>, vector<1x64xf32>
    %28 = vector.broadcast %27 : vector<1x64xf32> to vector<256x64xf32>
    %29 = arith.mulf %26, %28 : vector<256x64xf32>
    %c0_16 = arith.constant 0 : index
    %c0_17 = arith.constant 0 : index
    %30 = vector.load %arg7[%c0_16, %c0_17] : memref<1x64xf32, #tpu.memory_space<vmem>>, vector<1x64xf32>
    %31 = vector.broadcast %30 : vector<1x64xf32> to vector<256x64xf32>
    %32 = arith.addf %29, %31 : vector<256x64xf32>
    %cst_18 = arith.constant 0.000000e+00 : f32
    %33 = vector.broadcast %cst_18 : f32 to vector<256x64xf32>
    %34 = arith.maximumf %32, %33 : vector<256x64xf32>
    %35 = arith.truncf %34 : vector<256x64xf32> to vector<256x64xbf16>
    %36 = vector.shape_cast %35 : vector<256x64xbf16> to vector<1x16x16x64xbf16>
    %cst_19 = arith.constant 0.000000e+00 : bf16
    %37 = vector.broadcast %cst_19 : bf16 to vector<1x1x16x64xbf16>
    %38 = vector.extract_strided_slice %36 {offsets = [0, 0, 0, 0], sizes = [1, 15, 16, 64], strides = [1, 1, 1, 1]} : vector<1x16x16x64xbf16> to vector<1x15x16x64xbf16>
    %39 = tpu.concatenate %37, %38 in 1 : vector<1x1x16x64xbf16>, vector<1x15x16x64xbf16> -> vector<1x16x16x64xbf16>
    %40 = vector.extract_strided_slice %36 {offsets = [0, 1, 0, 0], sizes = [1, 15, 16, 64], strides = [1, 1, 1, 1]} : vector<1x16x16x64xbf16> to vector<1x15x16x64xbf16>
    %41 = tpu.concatenate %40, %37 in 1 : vector<1x15x16x64xbf16>, vector<1x1x16x64xbf16> -> vector<1x16x16x64xbf16>
    %42 = tpu.concatenate %39, %36, %41 in 3 : vector<1x16x16x64xbf16>, vector<1x16x16x64xbf16>, vector<1x16x16x64xbf16> -> vector<1x16x16x192xbf16>
    %43 = vector.shape_cast %42 : vector<1x16x16x192xbf16> to vector<256x192xbf16>
    %c0_20 = arith.constant 0 : index
    %c0_21 = arith.constant 0 : index
    %44 = vector.load %arg8[%c0_20, %c0_21] : memref<192x64xbf16, #tpu.memory_space<vmem>>, vector<192x64xbf16>
    %cst_22 = arith.constant dense<0.000000e+00> : vector<256x64xf32>
    %45 = tpu.matmul %43, %44, %cst_22 {dimension_numbers = #tpu.dot_dimension_numbers<[1], [0], [0], [1], [0, 0, 1, 1], [], []>} : vector<256x192xbf16>, vector<192x64xbf16>, vector<256x64xf32> -> vector<256x64xf32>
    %c0_23 = arith.constant 0 : index
    %c0_24 = arith.constant 0 : index
    %46 = vector.load %arg9[%c0_23, %c0_24] : memref<1x64xf32, #tpu.memory_space<vmem>>, vector<1x64xf32>
    %47 = vector.broadcast %46 : vector<1x64xf32> to vector<256x64xf32>
    %48 = arith.mulf %45, %47 : vector<256x64xf32>
    %c0_25 = arith.constant 0 : index
    %c0_26 = arith.constant 0 : index
    %49 = vector.load %arg10[%c0_25, %c0_26] : memref<1x64xf32, #tpu.memory_space<vmem>>, vector<1x64xf32>
    %50 = vector.broadcast %49 : vector<1x64xf32> to vector<256x64xf32>
    %51 = arith.addf %48, %50 : vector<256x64xf32>
    %cst_27 = arith.constant 0.000000e+00 : f32
    %52 = vector.broadcast %cst_27 : f32 to vector<256x64xf32>
    %53 = arith.maximumf %51, %52 : vector<256x64xf32>
    %54 = arith.truncf %53 : vector<256x64xf32> to vector<256x64xbf16>
    %55 = tpu.concatenate %14, %54 in 1 : vector<256x64xbf16>, vector<256x64xbf16> -> vector<256x128xbf16>
    %c0_28 = arith.constant 0 : index
    %c0_29 = arith.constant 0 : index
    %56 = vector.load %arg11[%c0_28, %c0_29] : memref<128x128xbf16, #tpu.memory_space<vmem>>, vector<128x128xbf16>
    %cst_30 = arith.constant dense<0.000000e+00> : vector<256x128xf32>
    %57 = tpu.matmul %55, %56, %cst_30 {dimension_numbers = #tpu.dot_dimension_numbers<[1], [0], [0], [1], [0, 0, 1, 1], [], []>} : vector<256x128xbf16>, vector<128x128xbf16>, vector<256x128xf32> -> vector<256x128xf32>
    %c0_31 = arith.constant 0 : index
    %c0_32 = arith.constant 0 : index
    %58 = vector.load %arg12[%c0_31, %c0_32] : memref<1x128xf32, #tpu.memory_space<vmem>>, vector<1x128xf32>
    %59 = vector.broadcast %58 : vector<1x128xf32> to vector<256x128xf32>
    %60 = arith.mulf %57, %59 : vector<256x128xf32>
    %c0_33 = arith.constant 0 : index
    %c0_34 = arith.constant 0 : index
    %61 = vector.load %arg13[%c0_33, %c0_34] : memref<1x128xf32, #tpu.memory_space<vmem>>, vector<1x128xf32>
    %62 = vector.broadcast %61 : vector<1x128xf32> to vector<256x128xf32>
    %63 = arith.addf %60, %62 : vector<256x128xf32>
    %64 = vector.shape_cast %63 : vector<256x128xf32> to vector<1x256x128xf32>
    %cst_35 = arith.constant dense<0.000000e+00> : vector<1x128xf32>
    %65 = vector.multi_reduction <add>, %64, %cst_35 [1] : vector<1x256x128xf32> to vector<1x128xf32>
    %cst_36 = arith.constant 2.560000e+02 : f32
    %66 = vector.broadcast %cst_36 : f32 to vector<1x128xf32>
    %67 = arith.divf %65, %66 : vector<1x128xf32>
    %68 = arith.truncf %67 : vector<1x128xf32> to vector<1x128xbf16>
    %c0_37 = arith.constant 0 : index
    %c0_38 = arith.constant 0 : index
    %69 = vector.load %arg14[%c0_37, %c0_38] : memref<128x8xbf16, #tpu.memory_space<vmem>>, vector<128x8xbf16>
    %cst_39 = arith.constant dense<0.000000e+00> : vector<1x8xf32>
    %70 = tpu.matmul %68, %69, %cst_39 {dimension_numbers = #tpu.dot_dimension_numbers<[1], [0], [0], [1], [0, 0, 1, 1], [], []>} : vector<1x128xbf16>, vector<128x8xbf16>, vector<1x8xf32> -> vector<1x8xf32>
    %cst_40 = arith.constant 0.000000e+00 : f32
    %71 = vector.broadcast %cst_40 : f32 to vector<1x8xf32>
    %72 = arith.maximumf %70, %71 : vector<1x8xf32>
    %73 = arith.truncf %72 : vector<1x8xf32> to vector<1x8xbf16>
    %c0_41 = arith.constant 0 : index
    %c0_42 = arith.constant 0 : index
    %74 = vector.load %arg15[%c0_41, %c0_42] : memref<8x128xbf16, #tpu.memory_space<vmem>>, vector<8x128xbf16>
    %cst_43 = arith.constant dense<0.000000e+00> : vector<1x128xf32>
    %75 = tpu.matmul %73, %74, %cst_43 {dimension_numbers = #tpu.dot_dimension_numbers<[1], [0], [0], [1], [0, 0, 1, 1], [], []>} : vector<1x8xbf16>, vector<8x128xbf16>, vector<1x128xf32> -> vector<1x128xf32>
    %cst_44 = arith.constant 0.000000e+00 : f32
    %76 = vector.broadcast %cst_44 : f32 to vector<1x128xf32>
    %77 = arith.subf %76, %75 : vector<1x128xf32>
    %78 = math.exp %77 : vector<1x128xf32>
    %cst_45 = arith.constant 1.000000e+00 : f32
    %79 = vector.broadcast %cst_45 : f32 to vector<1x128xf32>
    %80 = arith.addf %79, %78 : vector<1x128xf32>
    %cst_46 = arith.constant 1.000000e+00 : f32
    %81 = vector.broadcast %cst_46 : f32 to vector<1x128xf32>
    %82 = arith.divf %81, %80 : vector<1x128xf32>
    %83 = vector.shape_cast %82 : vector<1x128xf32> to vector<1x1x128xf32>
    %84 = vector.broadcast %83 : vector<1x1x128xf32> to vector<1x256x128xf32>
    %85 = arith.mulf %64, %84 : vector<1x256x128xf32>
    %86 = vector.shape_cast %0 : vector<1x16x16x128xf32> to vector<1x256x128xf32>
    %87 = arith.addf %85, %86 : vector<1x256x128xf32>
    %cst_47 = arith.constant 0.000000e+00 : f32
    %88 = vector.broadcast %cst_47 : f32 to vector<1x256x128xf32>
    %89 = arith.maximumf %87, %88 : vector<1x256x128xf32>
    %90 = vector.shape_cast %89 : vector<1x256x128xf32> to vector<1x16x16x128xf32>
    %c0_48 = arith.constant 0 : index
    %c0_49 = arith.constant 0 : index
    %c0_50 = arith.constant 0 : index
    %c0_51 = arith.constant 0 : index
    %91 = vector.load %arg16[%c0_48, %c0_49, %c0_50, %c0_51] : memref<1x16x16x128xf32, #tpu.memory_space<vmem>>, vector<1x16x16x128xf32>
    tpu.vector_store %arg16[%c0_48, %c0_49, %c0_50, %c0_51], %90 {strides = array<i32>} : memref<1x16x16x128xf32, #tpu.memory_space<vmem>>, vector<1x16x16x128xf32>,
    return
  }
  func.func @transform_0(%arg0: i32) -> (i32, i32, i32, i32) {
    %c0_i32 = arith.constant 0 : i32
    %c0_i32_0 = arith.constant 0 : i32
    %c0_i32_1 = arith.constant 0 : i32
    %c0_i32_2 = arith.constant 0 : i32
    return %arg0, %c0_i32, %c0_i32_0, %c0_i32_1 : i32, i32, i32, i32
  }
  func.func @transform_1(%arg0: i32) -> (i32, i32) {
    %c0_i32 = arith.constant 0 : i32
    %c0_i32_0 = arith.constant 0 : i32
    %c0_i32_1 = arith.constant 0 : i32
    return %c0_i32, %c0_i32_0 : i32, i32
  }
  func.func @transform_2(%arg0: i32) -> (i32, i32) {
    %c0_i32 = arith.constant 0 : i32
    %c0_i32_0 = arith.constant 0 : i32
    %c0_i32_1 = arith.constant 0 : i32
    return %c0_i32, %c0_i32_0 : i32, i32
  }
  func.func @transform_3(%arg0: i32) -> (i32, i32) {
    %c0_i32 = arith.constant 0 : i32
    %c0_i32_0 = arith.constant 0 : i32
    %c0_i32_1 = arith.constant 0 : i32
    return %c0_i32, %c0_i32_0 : i32, i32
  }
  func.func @transform_4(%arg0: i32) -> (i32, i32) {
    %c0_i32 = arith.constant 0 : i32
    %c0_i32_0 = arith.constant 0 : i32
    %c0_i32_1 = arith.constant 0 : i32
    return %c0_i32, %c0_i32_0 : i32, i32
  }
  func.func @transform_5(%arg0: i32) -> (i32, i32) {
    %c0_i32 = arith.constant 0 : i32
    %c0_i32_0 = arith.constant 0 : i32
    %c0_i32_1 = arith.constant 0 : i32
    return %c0_i32, %c0_i32_0 : i32, i32
  }
  func.func @transform_6(%arg0: i32) -> (i32, i32) {
    %c0_i32 = arith.constant 0 : i32
    %c0_i32_0 = arith.constant 0 : i32
    %c0_i32_1 = arith.constant 0 : i32
    return %c0_i32, %c0_i32_0 : i32, i32
  }
  func.func @transform_7(%arg0: i32) -> (i32, i32) {
    %c0_i32 = arith.constant 0 : i32
    %c0_i32_0 = arith.constant 0 : i32
    %c0_i32_1 = arith.constant 0 : i32
    return %c0_i32, %c0_i32_0 : i32, i32
  }
  func.func @transform_8(%arg0: i32) -> (i32, i32) {
    %c0_i32 = arith.constant 0 : i32
    %c0_i32_0 = arith.constant 0 : i32
    %c0_i32_1 = arith.constant 0 : i32
    return %c0_i32, %c0_i32_0 : i32, i32
  }
  func.func @transform_9(%arg0: i32) -> (i32, i32) {
    %c0_i32 = arith.constant 0 : i32
    %c0_i32_0 = arith.constant 0 : i32
    %c0_i32_1 = arith.constant 0 : i32
    return %c0_i32, %c0_i32_0 : i32, i32
  }
  func.func @transform_10(%arg0: i32) -> (i32, i32) {
    %c0_i32 = arith.constant 0 : i32
    %c0_i32_0 = arith.constant 0 : i32
    %c0_i32_1 = arith.constant 0 : i32
    return %c0_i32, %c0_i32_0 : i32, i32
  }
  func.func @transform_11(%arg0: i32) -> (i32, i32) {
    %c0_i32 = arith.constant 0 : i32
    %c0_i32_0 = arith.constant 0 : i32
    %c0_i32_1 = arith.constant 0 : i32
    return %c0_i32, %c0_i32_0 : i32, i32
  }
  func.func @transform_12(%arg0: i32) -> (i32, i32) {
    %c0_i32 = arith.constant 0 : i32
    %c0_i32_0 = arith.constant 0 : i32
    %c0_i32_1 = arith.constant 0 : i32
    return %c0_i32, %c0_i32_0 : i32, i32
  }
  func.func @transform_13(%arg0: i32) -> (i32, i32) {
    %c0_i32 = arith.constant 0 : i32
    %c0_i32_0 = arith.constant 0 : i32
    %c0_i32_1 = arith.constant 0 : i32
    return %c0_i32, %c0_i32_0 : i32, i32
  }
  func.func @transform_14(%arg0: i32) -> (i32, i32) {
    %c0_i32 = arith.constant 0 : i32
    %c0_i32_0 = arith.constant 0 : i32
    %c0_i32_1 = arith.constant 0 : i32
    return %c0_i32, %c0_i32_0 : i32, i32
  }
  func.func @transform_15(%arg0: i32) -> (i32, i32, i32, i32) {
    %c0_i32 = arith.constant 0 : i32
    %c0_i32_0 = arith.constant 0 : i32
    %c0_i32_1 = arith.constant 0 : i32
    %c0_i32_2 = arith.constant 0 : i32
    return %arg0, %c0_i32, %c0_i32_0, %c0_i32_1 : i32, i32, i32, i32
  }
}

</mosaic_0001>

<llo_original>
// kernel: tpu_custom_call.1
$region0: #{tpu_custom_call.1}
  #allocation0 [shape = 'u32[]', space=smem, size = 0x4, offset = 0x4, fixed_abs, tag = 'smem constant byte address 0x4 - core index']
  #allocation1 [shape = 'u32[144,128]{1,0:T(1,128)}', space=vmem, size = 0x12000, scoped, tag = 'internal scratch']
  %s0 = inlined_call_operand.hbm [shape: f32[2,16,16,128], index: 0, kind: input, shape index: {}]
  %s1 = inlined_call_operand.vmem [shape: bf16[128,128], index: 1, kind: input, shape index: {}]
  %s2 = inlined_call_operand.vmem [shape: f32[1,128], index: 2, kind: input, shape index: {}]
  %s3 = inlined_call_operand.vmem [shape: f32[1,128], index: 3, kind: input, shape index: {}]
  %s4 = inlined_call_operand.vmem [shape: bf16[192,64], index: 4, kind: input, shape index: {}]
  %s5 = inlined_call_operand.vmem [shape: f32[1,64], index: 5, kind: input, shape index: {}]
  %s6 = inlined_call_operand.vmem [shape: f32[1,64], index: 6, kind: input, shape index: {}]
  %s7 = inlined_call_operand.vmem [shape: bf16[192,64], index: 7, kind: input, shape index: {}]
  %s8 = inlined_call_operand.vmem [shape: f32[1,64], index: 8, kind: input, shape index: {}]
  %s9 = inlined_call_operand.vmem [shape: f32[1,64], index: 9, kind: input, shape index: {}]
  %s10 = inlined_call_operand.vmem [shape: bf16[128,128], index: 10, kind: input, shape index: {}]
  %s11 = inlined_call_operand.vmem [shape: f32[1,128], index: 11, kind: input, shape index: {}]
  %s12 = inlined_call_operand.vmem [shape: f32[1,128], index: 12, kind: input, shape index: {}]
  %s13 = inlined_call_operand.vmem [shape: bf16[128,8], index: 13, kind: input, shape index: {}]
  %s14 = inlined_call_operand.vmem [shape: bf16[8,128], index: 14, kind: input, shape index: {}]
  %s15 = inlined_call_operand.hbm [shape: f32[2,16,16,128], index: 15, kind: output, shape index: {}]
  %s16 = sld [smem:[#allocation0]]
  $region97: #{tpu_custom_call.1} parent=0
    _
  %s18 = ssub.s32 1, %s16
  %s19 = scalar_select 0, %s18, %s16
  $region1: #{tpu_custom_call.1} parent=0
    #allocation2 [shape = 'u8[262144]{0}', space=vmem, size = 0x40000, scoped, tag = 'input window, operand 0']
    #allocation3 [shape = 's32[2]{0}', space=sflag, size = 0x8, scoped, tag = 'scoped memory for tpu_custom_call.1']
    #allocation4 [shape = 's32[2]{0}', space=sflag, size = 0x8, scoped, tag = 'scoped memory for tpu_custom_call.1']
    #allocation5 [shape = 'u8[262144]{0}', space=vmem, size = 0x40000, scoped, tag = 'output window, operand 0']
    %20 = vsyncpa [#allocation3], 0
    %s21 = scalar_lea.sflag [#allocation3], 1
    %22 = vsyncpa %s21, 0
    %23 = vsyncpa [#allocation4], 0
    %s24 = scalar_lea.sflag [#allocation4], 1
    %25 = vsyncpa %s24, 0
    loop: start=0, step=1, limit=4
    $region2: #{tpu_custom_call.1} parent=1 // loop_pre_header
      _
    $region3: #{tpu_custom_call.1} parent=1 // loop_header
      %s27 = sphi 0, %s31
      %p28 = scmp.ge.s32.totalorder %s27, 4
      %s37 = sphi 0, %s39
      %s40 = sphi 0, %s37
      %s41 = sphi 0, %s40
      %s57 = sphi 0, %s41
      %s61 = sphi 0, %s61
      %s63 = sphi 0, %s61
      %s64 = sphi 0, %s63
      %s78 = sphi 0, %s64
      %s82 = sphi 0, %s82
      %s84 = sphi 0, %s82
      %s85 = sphi 0, %s84
      %s99 = sphi 0, %s85
      %s103 = sphi 0, %s103
      %s105 = sphi 0, %s103
      %s106 = sphi 0, %s105
      %s120 = sphi 0, %s106
      %s124 = sphi 0, %s124
      %s126 = sphi 0, %s124
      %s127 = sphi 0, %s126
      %s141 = sphi 0, %s127
      %s145 = sphi 0, %s145
      %s147 = sphi 0, %s145
      %s148 = sphi 0, %s147
      %s162 = sphi 0, %s148
      %s166 = sphi 0, %s166
      %s168 = sphi 0, %s166
      %s169 = sphi 0, %s168
      %s183 = sphi 0, %s169
      %s187 = sphi 0, %s187
      %s189 = sphi 0, %s187
      %s190 = sphi 0, %s189
      %s204 = sphi 0, %s190
      %s208 = sphi 0, %s208
      %s210 = sphi 0, %s208
      %s211 = sphi 0, %s210
      %s225 = sphi 0, %s211
      %s229 = sphi 0, %s229
      %s231 = sphi 0, %s229
      %s232 = sphi 0, %s231
      %s246 = sphi 0, %s232
      %s250 = sphi 0, %s250
      %s252 = sphi 0, %s250
      %s253 = sphi 0, %s252
      %s267 = sphi 0, %s253
      %s271 = sphi 0, %s271
      %s273 = sphi 0, %s271
      %s274 = sphi 0, %s273
      %s288 = sphi 0, %s274
      %s292 = sphi 0, %s292
      %s294 = sphi 0, %s292
      %s295 = sphi 0, %s294
      %s309 = sphi 0, %s295
      %s313 = sphi 0, %s313
      %s315 = sphi 0, %s313
      %s316 = sphi 0, %s315
      %s330 = sphi 0, %s316
      %s334 = sphi 0, %s334
      %s336 = sphi 0, %s334
      %s337 = sphi 0, %s336
      %s351 = sphi 0, %s337
      %s357 = sphi 0, %s359
      %s360 = sphi 0, %s357
      %s361 = sphi 0, %s360
      %s377 = sphi 0, %s361
    $region4: #{tpu_custom_call.1} parent=1 // loop_header_branch
      %30 = sbr.rel (%p28) target = $region8
    $region5: #{tpu_custom_call.1} parent=1 // loop_body
      %s32 = ssub.s32 %s27, 1
      %s33 = ssub.s32 %s27, 2
      %s34 = sadd.s32 %s27, 1
      %s35 = ssub.s32 %s27, %s34
      %p36 = scmp.eq.s32.totalorder %s35, 0
      %s38 = sadd.s32 %s37, 1
      %s39 = scalar_select %p36, %s37, %s38
      %p42 = pneg %p36
      %p43 = scmp.eq.s32.totalorder %s27, 1
      %p44 = por %p42, %p43
      %p45 = scmp.ne.s32.totalorder %s37, %s40
      %p46 = scmp.eq.s32.totalorder %s27, 0
      %p47 = por %p45, %p46
      %p48 = scmp.ne.s32.totalorder %s37, %s40
      %p49 = scmp.eq.s32.totalorder %s32, 1
      %p50 = por %p48, %p49
      %p51 = scmp.ne.s32.totalorder %s40, %s41
      %p52 = scmp.eq.s32.totalorder %s32, 0
      %p53 = por %p51, %p52
      %p54 = scmp.ne.s32.totalorder %s40, %s41
      %p55 = scmp.eq.s32.totalorder %s33, 1
      %p56 = por %p54, %p55
      %p58 = scmp.ne.s32.totalorder %s41, %s57
      %p59 = scmp.eq.s32.totalorder %s33, 0
      %p60 = por %p58, %p59
      %s62 = sadd.s32 %s61, 1
      %p65 = scmp.eq.s32.totalorder %s27, 1
      %p66 = scmp.ne.s32.totalorder %s61, %s63
      %p67 = scmp.eq.s32.totalorder %s27, 0
      %p68 = por %p66, %p67
      %p69 = scmp.ne.s32.totalorder %s61, %s63
      %p70 = scmp.eq.s32.totalorder %s32, 1
      %p71 = por %p69, %p70
      %p72 = scmp.ne.s32.totalorder %s63, %s64
      %p73 = scmp.eq.s32.totalorder %s32, 0
      %p74 = por %p72, %p73
      %p75 = scmp.ne.s32.totalorder %s63, %s64
      %p76 = scmp.eq.s32.totalorder %s33, 1
      %p77 = por %p75, %p76
      %p79 = scmp.ne.s32.totalorder %s64, %s78
      %p80 = scmp.eq.s32.totalorder %s33, 0
      %p81 = por %p79, %p80
      %s83 = sadd.s32 %s82, 1
      %p86 = scmp.eq.s32.totalorder %s27, 1
      %p87 = scmp.ne.s32.totalorder %s82, %s84
      %p88 = scmp.eq.s32.totalorder %s27, 0
      %p89 = por %p87, %p88
      %p90 = scmp.ne.s32.totalorder %s82, %s84
      %p91 = scmp.eq.s32.totalorder %s32, 1
      %p92 = por %p90, %p91
      %p93 = scmp.ne.s32.totalorder %s84, %s85
      %p94 = scmp.eq.s32.totalorder %s32, 0
      %p95 = por %p93, %p94
      %p96 = scmp.ne.s32.totalorder %s84, %s85
      %p97 = scmp.eq.s32.totalorder %s33, 1
      %p98 = por %p96, %p97
      %p100 = scmp.ne.s32.totalorder %s85, %s99
      %p101 = scmp.eq.s32.totalorder %s33, 0
      %p102 = por %p100, %p101
      %s104 = sadd.s32 %s103, 1
      %p107 = scmp.eq.s32.totalorder %s27, 1
      %p108 = scmp.ne.s32.totalorder %s103, %s105
      %p109 = scmp.eq.s32.totalorder %s27, 0
      %p110 = por %p108, %p109
      %p111 = scmp.ne.s32.totalorder %s103, %s105
      %p112 = scmp.eq.s32.totalorder %s32, 1
      %p113 = por %p111, %p112
      %p114 = scmp.ne.s32.totalorder %s105, %s106
      %p115 = scmp.eq.s32.totalorder %s32, 0
      %p116 = por %p114, %p115
      %p117 = scmp.ne.s32.totalorder %s105, %s106
      %p118 = scmp.eq.s32.totalorder %s33, 1
      %p119 = por %p117, %p118
      %p121 = scmp.ne.s32.totalorder %s106, %s120
      %p122 = scmp.eq.s32.totalorder %s33, 0
      %p123 = por %p121, %p122
      %s125 = sadd.s32 %s124, 1
      %p128 = scmp.eq.s32.totalorder %s27, 1
      %p129 = scmp.ne.s32.totalorder %s124, %s126
      %p130 = scmp.eq.s32.totalorder %s27, 0
      %p131 = por %p129, %p130
      %p132 = scmp.ne.s32.totalorder %s124, %s126
      %p133 = scmp.eq.s32.totalorder %s32, 1
      %p134 = por %p132, %p133
      %p135 = scmp.ne.s32.totalorder %s126, %s127
      %p136 = scmp.eq.s32.totalorder %s32, 0
      %p137 = por %p135, %p136
      %p138 = scmp.ne.s32.totalorder %s126, %s127
      %p139 = scmp.eq.s32.totalorder %s33, 1
      %p140 = por %p138, %p139
      %p142 = scmp.ne.s32.totalorder %s127, %s141
      %p143 = scmp.eq.s32.totalorder %s33, 0
      %p144 = por %p142, %p143
      %s146 = sadd.s32 %s145, 1
      %p149 = scmp.eq.s32.totalorder %s27, 1
      %p150 = scmp.ne.s32.totalorder %s145, %s147
      %p151 = scmp.eq.s32.totalorder %s27, 0
      %p152 = por %p150, %p151
      %p153 = scmp.ne.s32.totalorder %s145, %s147
      %p154 = scmp.eq.s32.totalorder %s32, 1
      %p155 = por %p153, %p154
      %p156 = scmp.ne.s32.totalorder %s147, %s148
      %p157 = scmp.eq.s32.totalorder %s32, 0
      %p158 = por %p156, %p157
      %p159 = scmp.ne.s32.totalorder %s147, %s148
      %p160 = scmp.eq.s32.totalorder %s33, 1
      %p161 = por %p159, %p160
      %p163 = scmp.ne.s32.totalorder %s148, %s162
      %p164 = scmp.eq.s32.totalorder %s33, 0
      %p165 = por %p163, %p164
      %s167 = sadd.s32 %s166, 1
      %p170 = scmp.eq.s32.totalorder %s27, 1
      %p171 = scmp.ne.s32.totalorder %s166, %s168
      %p172 = scmp.eq.s32.totalorder %s27, 0
      %p173 = por %p171, %p172
      %p174 = scmp.ne.s32.totalorder %s166, %s168
      %p175 = scmp.eq.s32.totalorder %s32, 1
      %p176 = por %p174, %p175
      %p177 = scmp.ne.s32.totalorder %s168, %s169
      %p178 = scmp.eq.s32.totalorder %s32, 0
      %p179 = por %p177, %p178
      %p180 = scmp.ne.s32.totalorder %s168, %s169
      %p181 = scmp.eq.s32.totalorder %s33, 1
      %p182 = por %p180, %p181
      %p184 = scmp.ne.s32.totalorder %s169, %s183
      %p185 = scmp.eq.s32.totalorder %s33, 0
      %p186 = por %p184, %p185
      %s188 = sadd.s32 %s187, 1
      %p191 = scmp.eq.s32.totalorder %s27, 1
      %p192 = scmp.ne.s32.totalorder %s187, %s189
      %p193 = scmp.eq.s32.totalorder %s27, 0
      %p194 = por %p192, %p193
      %p195 = scmp.ne.s32.totalorder %s187, %s189
      %p196 = scmp.eq.s32.totalorder %s32, 1
      %p197 = por %p195, %p196
      %p198 = scmp.ne.s32.totalorder %s189, %s190
      %p199 = scmp.eq.s32.totalorder %s32, 0
      %p200 = por %p198, %p199
      %p201 = scmp.ne.s32.totalorder %s189, %s190
      %p202 = scmp.eq.s32.totalorder %s33, 1
      %p203 = por %p201, %p202
      %p205 = scmp.ne.s32.totalorder %s190, %s204
      %p206 = scmp.eq.s32.totalorder %s33, 0
      %p207 = por %p205, %p206
      %s209 = sadd.s32 %s208, 1
      %p212 = scmp.eq.s32.totalorder %s27, 1
      %p213 = scmp.ne.s32.totalorder %s208, %s210
      %p214 = scmp.eq.s32.totalorder %s27, 0
      %p215 = por %p213, %p214
      %p216 = scmp.ne.s32.totalorder %s208, %s210
      %p217 = scmp.eq.s32.totalorder %s32, 1
      %p218 = por %p216, %p217
      %p219 = scmp.ne.s32.totalorder %s210, %s211
      %p220 = scmp.eq.s32.totalorder %s32, 0
      %p221 = por %p219, %p220
      %p222 = scmp.ne.s32.totalorder %s210, %s211
      %p223 = scmp.eq.s32.totalorder %s33, 1
      %p224 = por %p222, %p223
      %p226 = scmp.ne.s32.totalorder %s211, %s225
      %p227 = scmp.eq.s32.totalorder %s33, 0
      %p228 = por %p226, %p227
      %s230 = sadd.s32 %s229, 1
      %p233 = scmp.eq.s32.totalorder %s27, 1
      %p234 = scmp.ne.s32.totalorder %s229, %s231
      %p235 = scmp.eq.s32.totalorder %s27, 0
      %p236 = por %p234, %p235
      %p237 = scmp.ne.s32.totalorder %s229, %s231
      %p238 = scmp.eq.s32.totalorder %s32, 1
      %p239 = por %p237, %p238
      %p240 = scmp.ne.s32.totalorder %s231, %s232
      %p241 = scmp.eq.s32.totalorder %s32, 0
      %p242 = por %p240, %p241
      %p243 = scmp.ne.s32.totalorder %s231, %s232
      %p244 = scmp.eq.s32.totalorder %s33, 1
      %p245 = por %p243, %p244
      %p247 = scmp.ne.s32.totalorder %s232, %s246
      %p248 = scmp.eq.s32.totalorder %s33, 0
      %p249 = por %p247, %p248
      %s251 = sadd.s32 %s250, 1
      %p254 = scmp.eq.s32.totalorder %s27, 1
      %p255 = scmp.ne.s32.totalorder %s250, %s252
      %p256 = scmp.eq.s32.totalorder %s27, 0
      %p257 = por %p255, %p256
      %p258 = scmp.ne.s32.totalorder %s250, %s252
      %p259 = scmp.eq.s32.totalorder %s32, 1
      %p260 = por %p258, %p259
      %p261 = scmp.ne.s32.totalorder %s252, %s253
      %p262 = scmp.eq.s32.totalorder %s32, 0
      %p263 = por %p261, %p262
      %p264 = scmp.ne.s32.totalorder %s252, %s253
      %p265 = scmp.eq.s32.totalorder %s33, 1
      %p266 = por %p264, %p265
      %p268 = scmp.ne.s32.totalorder %s253, %s267
      %p269 = scmp.eq.s32.totalorder %s33, 0
      %p270 = por %p268, %p269
      %s272 = sadd.s32 %s271, 1
      %p275 = scmp.eq.s32.totalorder %s27, 1
      %p276 = scmp.ne.s32.totalorder %s271, %s273
      %p277 = scmp.eq.s32.totalorder %s27, 0
      %p278 = por %p276, %p277
      %p279 = scmp.ne.s32.totalorder %s271, %s273
      %p280 = scmp.eq.s32.totalorder %s32, 1
      %p281 = por %p279, %p280
      %p282 = scmp.ne.s32.totalorder %s273, %s274
      %p283 = scmp.eq.s32.totalorder %s32, 0
      %p284 = por %p282, %p283
      %p285 = scmp.ne.s32.totalorder %s273, %s274
      %p286 = scmp.eq.s32.totalorder %s33, 1
      %p287 = por %p285, %p286
      %p289 = scmp.ne.s32.totalorder %s274, %s288
      %p290 = scmp.eq.s32.totalorder %s33, 0
      %p291 = por %p289, %p290
      %s293 = sadd.s32 %s292, 1
      %p296 = scmp.eq.s32.totalorder %s27, 1
      %p297 = scmp.ne.s32.totalorder %s292, %s294
      %p298 = scmp.eq.s32.totalorder %s27, 0
      %p299 = por %p297, %p298
      %p300 = scmp.ne.s32.totalorder %s292, %s294
      %p301 = scmp.eq.s32.totalorder %s32, 1
      %p302 = por %p300, %p301
      %p303 = scmp.ne.s32.totalorder %s294, %s295
      %p304 = scmp.eq.s32.totalorder %s32, 0
      %p305 = por %p303, %p304
      %p306 = scmp.ne.s32.totalorder %s294, %s295
      %p307 = scmp.eq.s32.totalorder %s33, 1
      %p308 = por %p306, %p307
      %p310 = scmp.ne.s32.totalorder %s295, %s309
      %p311 = scmp.eq.s32.totalorder %s33, 0
      %p312 = por %p310, %p311
      %s314 = sadd.s32 %s313, 1
      %p317 = scmp.eq.s32.totalorder %s27, 1
      %p318 = scmp.ne.s32.totalorder %s313, %s315
      %p319 = scmp.eq.s32.totalorder %s27, 0
      %p320 = por %p318, %p319
      %p321 = scmp.ne.s32.totalorder %s313, %s315
      %p322 = scmp.eq.s32.totalorder %s32, 1
      %p323 = por %p321, %p322
      %p324 = scmp.ne.s32.totalorder %s315, %s316
      %p325 = scmp.eq.s32.totalorder %s32, 0
      %p326 = por %p324, %p325
      %p327 = scmp.ne.s32.totalorder %s315, %s316
      %p328 = scmp.eq.s32.totalorder %s33, 1
      %p329 = por %p327, %p328
      %p331 = scmp.ne.s32.totalorder %s316, %s330
      %p332 = scmp.eq.s32.totalorder %s33, 0
      %p333 = por %p331, %p332
      %s335 = sadd.s32 %s334, 1
      %p338 = scmp.eq.s32.totalorder %s27, 1
      %p339 = scmp.ne.s32.totalorder %s334, %s336
      %p340 = scmp.eq.s32.totalorder %s27, 0
      %p341 = por %p339, %p340
      %p342 = scmp.ne.s32.totalorder %s334, %s336
      %p343 = scmp.eq.s32.totalorder %s32, 1
      %p344 = por %p342, %p343
      %p345 = scmp.ne.s32.totalorder %s336, %s337
      %p346 = scmp.eq.s32.totalorder %s32, 0
      %p347 = por %p345, %p346
      %p348 = scmp.ne.s32.totalorder %s336, %s337
      %p349 = scmp.eq.s32.totalorder %s33, 1
      %p350 = por %p348, %p349
      %p352 = scmp.ne.s32.totalorder %s337, %s351
      %p353 = scmp.eq.s32.totalorder %s33, 0
      %p354 = por %p352, %p353
      %s355 = ssub.s32 %s27, %s34
      %p356 = scmp.eq.s32.totalorder %s355, 0
      %s358 = sadd.s32 %s357, 1
      %s359 = scalar_select %p356, %s357, %s358
      %p362 = pneg %p356
      %p363 = scmp.eq.s32.totalorder %s27, 1
      %p364 = por %p362, %p363
      %p365 = scmp.ne.s32.totalorder %s357, %s360
      %p366 = scmp.eq.s32.totalorder %s27, 0
      %p367 = por %p365, %p366
      %p368 = scmp.ne.s32.totalorder %s357, %s360
      %p369 = scmp.eq.s32.totalorder %s32, 1
      %p370 = por %p368, %p369
      %p371 = scmp.ne.s32.totalorder %s360, %s361
      %p372 = scmp.eq.s32.totalorder %s32, 0
      %p373 = por %p371, %p372
      %p374 = scmp.ne.s32.totalorder %s360, %s361
      %p375 = scmp.eq.s32.totalorder %s33, 1
      %p376 = por %p374, %p375
      %p378 = scmp.ne.s32.totalorder %s361, %s377
      %p379 = scmp.eq.s32.totalorder %s33, 0
      %p380 = por %p378, %p379
      %p381 = scmp.le.s32.totalorder 1, %s27
      %p382 = scmp.lt.s32.totalorder %s27, 3
      %p383 = pnand %p381, %p382
      %p384 = pneg %p383
      // Predicated region
      $region9: #{tpu_custom_call.1} parent=5 // pred_check
        _
      $region10: #{tpu_custom_call.1} parent=5 // pred_check_branch
        %386 = sbr.rel (%p383) target = $region12
      $region11: #{tpu_custom_call.1} parent=5 // pred_region
        %s387 = ssub.s32 %s27, 1
        // Predicated region
        $region13: #{tpu_custom_call.1} parent=11 // pred_check
          %p388 = pneg %p74
        $region14: #{tpu_custom_call.1} parent=11 // pred_check_branch
          %390 = sbr.rel (%p388) target = $region16
        $region15: #{tpu_custom_call.1} parent=11 // pred_region
          _
        $region16: #{tpu_custom_call.1} parent=11 // pred_fallthru
          _
        // Predicated region
        $region17: #{tpu_custom_call.1} parent=11 // pred_check
          %p391 = pneg %p95
        $region18: #{tpu_custom_call.1} parent=11 // pred_check_branch
          %393 = sbr.rel (%p391) target = $region20
        $region19: #{tpu_custom_call.1} parent=11 // pred_region
          _
        $region20: #{tpu_custom_call.1} parent=11 // pred_fallthru
          _
        // Predicated region
        $region21: #{tpu_custom_call.1} parent=11 // pred_check
          %p394 = pneg %p116
        $region22: #{tpu_custom_call.1} parent=11 // pred_check_branch
          %396 = sbr.rel (%p394) target = $region24
        $region23: #{tpu_custom_call.1} parent=11 // pred_region
          _
        $region24: #{tpu_custom_call.1} parent=11 // pred_fallthru
          _
        // Predicated region
        $region25: #{tpu_custom_call.1} parent=11 // pred_check
          %p397 = pneg %p137
        $region26: #{tpu_custom_call.1} parent=11 // pred_check_branch
          %399 = sbr.rel (%p397) target = $region28
        $region27: #{tpu_custom_call.1} parent=11 // pred_region
          _
        $region28: #{tpu_custom_call.1} parent=11 // pred_fallthru
          _
        // Predicated region
        $region29: #{tpu_custom_call.1} parent=11 // pred_check
          %p400 = pneg %p158
        $region30: #{tpu_custom_call.1} parent=11 // pred_check_branch
          %402 = sbr.rel (%p400) target = $region32
        $region31: #{tpu_custom_call.1} parent=11 // pred_region
          _
        $region32: #{tpu_custom_call.1} parent=11 // pred_fallthru
          _
        // Predicated region
        $region33: #{tpu_custom_call.1} parent=11 // pred_check
          %p403 = pneg %p179
        $region34: #{tpu_custom_call.1} parent=11 // pred_check_branch
          %405 = sbr.rel (%p403) target = $region36
        $region35: #{tpu_custom_call.1} parent=11 // pred_region
          _
        $region36: #{tpu_custom_call.1} parent=11 // pred_fallthru
          _
        // Predicated region
        $region37: #{tpu_custom_call.1} parent=11 // pred_check
          %p406 = pneg %p200
        $region38: #{tpu_custom_call.1} parent=11 // pred_check_branch
          %408 = sbr.rel (%p406) target = $region40
        $region39: #{tpu_custom_call.1} parent=11 // pred_region
          _
        $region40: #{tpu_custom_call.1} parent=11 // pred_fallthru
          _
        // Predicated region
        $region41: #{tpu_custom_call.1} parent=11 // pred_check
          %p409 = pneg %p221
        $region42: #{tpu_custom_call.1} parent=11 // pred_check_branch
          %411 = sbr.rel (%p409) target = $region44
        $region43: #{tpu_custom_call.1} parent=11 // pred_region
          _
        $region44: #{tpu_custom_call.1} parent=11 // pred_fallthru
          _
        // Predicated region
        $region45: #{tpu_custom_call.1} parent=11 // pred_check
          %p412 = pneg %p242
        $region46: #{tpu_custom_call.1} parent=11 // pred_check_branch
          %414 = sbr.rel (%p412) target = $region48
        $region47: #{tpu_custom_call.1} parent=11 // pred_region
          _
        $region48: #{tpu_custom_call.1} parent=11 // pred_fallthru
          _
        // Predicated region
        $region49: #{tpu_custom_call.1} parent=11 // pred_check
          %p415 = pneg %p263
        $region50: #{tpu_custom_call.1} parent=11 // pred_check_branch
          %417 = sbr.rel (%p415) target = $region52
        $region51: #{tpu_custom_call.1} parent=11 // pred_region
          _
        $region52: #{tpu_custom_call.1} parent=11 // pred_fallthru
          _
        // Predicated region
        $region53: #{tpu_custom_call.1} parent=11 // pred_check
          %p418 = pneg %p284
        $region54: #{tpu_custom_call.1} parent=11 // pred_check_branch
          %420 = sbr.rel (%p418) target = $region56
        $region55: #{tpu_custom_call.1} parent=11 // pred_region
          _
        $region56: #{tpu_custom_call.1} parent=11 // pred_fallthru
          _
        // Predicated region
        $region57: #{tpu_custom_call.1} parent=11 // pred_check
          %p421 = pneg %p305
        $region58: #{tpu_custom_call.1} parent=11 // pred_check_branch
          %423 = sbr.rel (%p421) target = $region60
        $region59: #{tpu_custom_call.1} parent=11 // pred_region
          _
        $region60: #{tpu_custom_call.1} parent=11 // pred_fallthru
          _
        // Predicated region
        $region61: #{tpu_custom_call.1} parent=11 // pred_check
          %p424 = pneg %p326
        $region62: #{tpu_custom_call.1} parent=11 // pred_check_branch
          %426 = sbr.rel (%p424) target = $region64
        $region63: #{tpu_custom_call.1} parent=11 // pred_region
          _
        $region64: #{tpu_custom_call.1} parent=11 // pred_fallthru
          _
        // Predicated region
        $region65: #{tpu_custom_call.1} parent=11 // pred_check
          %p427 = pneg %p347
        $region66: #{tpu_custom_call.1} parent=11 // pred_check_branch
          %429 = sbr.rel (%p427) target = $region68
        $region67: #{tpu_custom_call.1} parent=11 // pred_region
          _
        $region68: #{tpu_custom_call.1} parent=11 // pred_fallthru
          _
      $region12: #{tpu_custom_call.1} parent=5 // pred_fallthru
        _
      %p430 = scmp.lt.s32.totalorder %s27, 2
      // Predicated region
      $region69: #{tpu_custom_call.1} parent=5 // pred_check
        %p431 = pneg %p430
      $region70: #{tpu_custom_call.1} parent=5 // pred_check_branch
        %433 = sbr.rel (%p431) target = $region72
      $region71: #{tpu_custom_call.1} parent=5 // pred_region
        // Predicated region
        $region73: #{tpu_custom_call.1} parent=71 // pred_check
          %p434 = pneg %p47
        $region74: #{tpu_custom_call.1} parent=71 // pred_check_branch
          %436 = sbr.rel (%p434) target = $region76
        $region75: #{tpu_custom_call.1} parent=71 // pred_region
          %s437 = sand.u32 %s37, 1
          %s438 = scalar_lea.sflag [#allocation3], %s437
          %s439 = sand.u32 %s37, 1
          %s440 = smul.addr %s439, 256
          %s441 = scalar_lea.vmem [#allocation2], %s440
          %s443 = ssub.s32 4096, 4096
          %444 = vsyncadd %s438, %s443
          %s445 = smul.addr %s27, 32
          %s446 = smul.addr %s445, 128
          %s447 = scalar_lea.hbm %s0, %s446
          %s448 = sshll.u32 %s441, 4
          %s449 = int_to_ptr.vmem [resolvable:$true] %s448
          %454 = dma.hbm_to_vmem [thread:$0]  %s447, 4096, %s449, %s438, 128, 128, 8
        $region76: #{tpu_custom_call.1} parent=71 // pred_fallthru
          _
      $region72: #{tpu_custom_call.1} parent=5 // pred_fallthru
        _
      %p455 = scmp.le.s32.totalorder 1, %s27
      %p456 = scmp.lt.s32.totalorder %s27, 3
      %p457 = pnand %p455, %p456
      %p458 = pneg %p457
      // Predicated region
      $region77: #{tpu_custom_call.1} parent=5 // pred_check
        _
      $region78: #{tpu_custom_call.1} parent=5 // pred_check_branch
        %460 = sbr.rel (%p457) target = $region80
      $region79: #{tpu_custom_call.1} parent=5 // pred_region
        %s461 = ssub.s32 %s27, 1
        %s462 = sand.u32 %s40, 1
        %s463 = scalar_lea.sflag [#allocation3], %s462
        %s464 = sand.u32 %s40, 1
        %s465 = smul.addr %s464, 256
        %s466 = scalar_lea.vmem [#allocation2], %s465
        // Predicated region
        $region81: #{tpu_custom_call.1} parent=79 // pred_check
          %p467 = pneg %p53
        $region82: #{tpu_custom_call.1} parent=79 // pred_check_branch
          %469 = sbr.rel (%p467) target = $region84
        $region83: #{tpu_custom_call.1} parent=79 // pred_region
          %470 = dma.done %s463, 4096
        $region84: #{tpu_custom_call.1} parent=79 // pred_fallthru
          _
        %s471 = sand.u32 %s40, 1
        %s472 = scalar_lea.sflag [#allocation3], %s471
        %s473 = sand.u32 %s40, 1
        %s474 = smul.addr %s473, 256
        %s475 = scalar_lea.vmem [#allocation2], %s474
        %p476 = pneg %p53
        %p477 = pneg %p50
        %p478 = pneg %p74
        %p479 = pneg %p71
        %p480 = pneg %p95
        %p481 = pneg %p92
        %p482 = pneg %p116
        %p483 = pneg %p113
        %p484 = pneg %p137
        %p485 = pneg %p134
        %p486 = pneg %p158
        %p487 = pneg %p155
        %p488 = pneg %p179
        %p489 = pneg %p176
        %p490 = pneg %p200
        %p491 = pneg %p197
        %p492 = pneg %p221
        %p493 = pneg %p218
        %p494 = pneg %p242
        %p495 = pneg %p239
        %p496 = pneg %p263
        %p497 = pneg %p260
        %p498 = pneg %p284
        %p499 = pneg %p281
        %p500 = pneg %p305
        %p501 = pneg %p302
        %p502 = pneg %p326
        %p503 = pneg %p323
        %p504 = pneg %p347
        %p505 = pneg %p344
        %p506 = pneg %p373
        %p507 = pneg %p370
        %s508 = sand.u32 %s360, 1
        %s509 = scalar_lea.sflag [#allocation4], %s508
        %s510 = sand.u32 %s360, 1
        %s511 = smul.addr %s510, 256
        %s512 = scalar_lea.vmem [#allocation5], %s511
        %v514 = vld [vmem:[%s466] sm:$0xff]
        %v515 = vld [vmem:[%s466 + $0x8] sm:$0xff]
        %v516 = vld [vmem:[%s466 + $0x10] sm:$0xff]
        %v517 = vld [vmem:[%s466 + $0x18] sm:$0xff]
        %v518 = vld [vmem:[%s466 + $0x20] sm:$0xff]
        %v519 = vld [vmem:[%s466 + $0x28] sm:$0xff]
        %v520 = vld [vmem:[%s466 + $0x30] sm:$0xff]
        %v521 = vld [vmem:[%s466 + $0x38] sm:$0xff]
        %v522 = vld [vmem:[%s466 + $0x40] sm:$0xff]
        %v523 = vld [vmem:[%s466 + $0x48] sm:$0xff]
        %v524 = vld [vmem:[%s466 + $0x50] sm:$0xff]
        %v525 = vld [vmem:[%s466 + $0x58] sm:$0xff]
        %v526 = vld [vmem:[%s466 + $0x60] sm:$0xff]
        %v527 = vld [vmem:[%s466 + $0x68] sm:$0xff]
        %v528 = vld [vmem:[%s466 + $0x70] sm:$0xff]
        %v529 = vld [vmem:[%s466 + $0x78] sm:$0xff]
        %v530 = vld [vmem:[%s466 + $0x80] sm:$0xff]
        %v531 = vld [vmem:[%s466 + $0x88] sm:$0xff]
        %v532 = vld [vmem:[%s466 + $0x90] sm:$0xff]
        %v533 = vld [vmem:[%s466 + $0x98] sm:$0xff]
        %v534 = vld [vmem:[%s466 + $0xa0] sm:$0xff]
        %v535 = vld [vmem:[%s466 + $0xa8] sm:$0xff]
        %v536 = vld [vmem:[%s466 + $0xb0] sm:$0xff]
        %v537 = vld [vmem:[%s466 + $0xb8] sm:$0xff]
        %v538 = vld [vmem:[%s466 + $0xc0] sm:$0xff]
        %v539 = vld [vmem:[%s466 + $0xc8] sm:$0xff]
        %v540 = vld [vmem:[%s466 + $0xd0] sm:$0xff]
        %v541 = vld [vmem:[%s466 + $0xd8] sm:$0xff]
        %v542 = vld [vmem:[%s466 + $0xe0] sm:$0xff]
        %v543 = vld [vmem:[%s466 + $0xe8] sm:$0xff]
        %v544 = vld [vmem:[%s466 + $0xf0] sm:$0xff]
        %v545 = vld [vmem:[%s466 + $0xf8] sm:$0xff]
        %v546 = vpack.c.bf16 %v515, %v514
        %v547 = vpack.c.bf16 %v517, %v516
        %v548 = vpack.c.bf16 %v519, %v518
        %v549 = vpack.c.bf16 %v521, %v520
        %v550 = vpack.c.bf16 %v523, %v522
        %v551 = vpack.c.bf16 %v525, %v524
        %v552 = vpack.c.bf16 %v527, %v526
        %v553 = vpack.c.bf16 %v529, %v528
        %v554 = vpack.c.bf16 %v531, %v530
        %v555 = vpack.c.bf16 %v533, %v532
        %v556 = vpack.c.bf16 %v535, %v534
        %v557 = vpack.c.bf16 %v537, %v536
        %v558 = vpack.c.bf16 %v539, %v538
        %v559 = vpack.c.bf16 %v541, %v540
        %v560 = vpack.c.bf16 %v543, %v542
        %v561 = vpack.c.bf16 %v545, %v544
        %v562 = vld [vmem:[%s1] sm:$0xf]
        %v563 = vld [vmem:[%s1 + $0x4] sm:$0xf]
        %v564 = vld [vmem:[%s1 + $0x8] sm:$0xf]
        %v565 = vld [vmem:[%s1 + $0xc] sm:$0xf]
        %v566 = vld [vmem:[%s1 + $0x10] sm:$0xf]
        %v567 = vld [vmem:[%s1 + $0x14] sm:$0xf]
        %v568 = vld [vmem:[%s1 + $0x18] sm:$0xf]
        %v569 = vld [vmem:[%s1 + $0x1c] sm:$0xf]
        %v570 = vld [vmem:[%s1 + $0x20] sm:$0xf]
        %v571 = vld [vmem:[%s1 + $0x24] sm:$0xf]
        %v572 = vld [vmem:[%s1 + $0x28] sm:$0xf]
        %v573 = vld [vmem:[%s1 + $0x2c] sm:$0xf]
        %v574 = vld [vmem:[%s1 + $0x30] sm:$0xf]
        %v575 = vld [vmem:[%s1 + $0x34] sm:$0xf]
        %v576 = vld [vmem:[%s1 + $0x38] sm:$0xf]
        %v577 = vld [vmem:[%s1 + $0x3c] sm:$0xf]
        %v594 = vunpack.c.l.b16 %v562
        %v595 = vunpack.c.l.b16 %v563
        %v596 = vunpack.c.l.b16 %v564
        %v597 = vunpack.c.l.b16 %v565
        %v598 = vunpack.c.l.b16 %v566
        %v599 = vunpack.c.l.b16 %v567
        %v600 = vunpack.c.l.b16 %v568
        %v601 = vunpack.c.l.b16 %v569
        %v602 = vunpack.c.l.b16 %v570
        %v603 = vunpack.c.l.b16 %v571
        %v604 = vunpack.c.l.b16 %v572
        %v605 = vunpack.c.l.b16 %v573
        %v606 = vunpack.c.l.b16 %v574
        %v607 = vunpack.c.l.b16 %v575
        %v608 = vunpack.c.l.b16 %v576
        %v609 = vunpack.c.l.b16 %v577
        %v610 = vpack.c.b16 %v595, %v594
        %v611 = vpack.c.b16 %v597, %v596
        %v612 = vpack.c.b16 %v599, %v598
        %v613 = vpack.c.b16 %v601, %v600
        %v614 = vpack.c.b16 %v603, %v602
        %v615 = vpack.c.b16 %v605, %v604
        %v616 = vpack.c.b16 %v607, %v606
        %v617 = vpack.c.b16 %v609, %v608
        %626 = vmatprep.subr.bf16.mxu0 0
        %627 = vmatpush1.bf16.msra.mxu0 %v610
        %628 = vmatprep.subr.bf16.mxu0 0
        %629 = vmatpush1.bf16.msra.mxu0 %v611
        %630 = vmatprep.subr.bf16.mxu0 0
        %631 = vmatpush1.bf16.msra.mxu0 %v612
        %632 = vmatprep.subr.bf16.mxu0 0
        %633 = vmatpush1.bf16.msra.mxu0 %v613
        %634 = vmatprep.subr.bf16.mxu0 0
        %635 = vmatpush1.bf16.msra.mxu0 %v614
        %636 = vmatprep.subr.bf16.mxu0 0
        %637 = vmatpush1.bf16.msra.mxu0 %v615
        %638 = vmatprep.subr.bf16.mxu0 0
        %639 = vmatpush1.bf16.msra.mxu0 %v616
        %640 = vmatprep.subr.bf16.mxu0 0
        %641 = vmatpush1.bf16.msra.mxu0 %v617
        %642 = vmatprep.subr.bf16.mxu0 0
        %643 = vmatpush1.bf16.msra.mxu0 0
        %644 = vmatprep.subr.bf16.mxu0 0
        %645 = vmatpush1.bf16.msra.mxu0 0
        %646 = vmatprep.subr.bf16.mxu0 0
        %647 = vmatpush1.bf16.msra.mxu0 0
        %648 = vmatprep.subr.bf16.mxu0 0
        %649 = vmatpush1.bf16.msra.mxu0 0
        %650 = vmatprep.subr.bf16.mxu0 0
        %651 = vmatpush1.bf16.msra.mxu0 0
        %652 = vmatprep.subr.bf16.mxu0 0
        %653 = vmatpush1.bf16.msra.mxu0 0
        %654 = vmatprep.subr.bf16.mxu0 0
        %655 = vmatpush1.bf16.msra.mxu0 0
        %656 = vmatprep.subr.bf16.mxu0 0
        %657 = vmatpush1.bf16.msra.mxu0 0
        %658 = vmatprep.mubr.bf16.mxu0 0
        %659 = vmatmul.mubr.bf16.gmra.mrb[0].mxu0 %v546
        %v660 = vpop.f32.mrb[0].mxu0
        %v661 = vadd.f32 0.0, %v660
        %v662 = vpop.f32.mrb[0].mxu0
        %v663 = vpop.f32.mrb[0].mxu0
        %v664 = vadd.f32 0.0, %v663
        %v665 = vpop.f32.mrb[0].mxu0
        %666 = vmatprep.mubr.bf16.mxu0 0
        %667 = vmatmul.mubr.bf16.gmra.mrb[0].mxu0 %v547
        %v668 = vpop.f32.mrb[0].mxu0
        %v669 = vadd.f32 0.0, %v668
        %v670 = vpop.f32.mrb[0].mxu0
        %v671 = vpop.f32.mrb[0].mxu0
        %v672 = vadd.f32 0.0, %v671
        %v673 = vpop.f32.mrb[0].mxu0
        %674 = vmatprep.mubr.bf16.mxu0 0
        %675 = vmatmul.mubr.bf16.gmra.mrb[0].mxu0 %v548
        %v676 = vpop.f32.mrb[0].mxu0
        %v677 = vadd.f32 0.0, %v676
        %v678 = vpop.f32.mrb[0].mxu0
        %v679 = vpop.f32.mrb[0].mxu0
        %v680 = vadd.f32 0.0, %v679
        %v681 = vpop.f32.mrb[0].mxu0
        %682 = vmatprep.mubr.bf16.mxu0 0
        %683 = vmatmul.mubr.bf16.gmra.mrb[0].mxu0 %v549
        %v684 = vpop.f32.mrb[0].mxu0
        %v685 = vadd.f32 0.0, %v684
        %v686 = vpop.f32.mrb[0].mxu0
        %v687 = vpop.f32.mrb[0].mxu0
        %v688 = vadd.f32 0.0, %v687
        %v689 = vpop.f32.mrb[0].mxu0
        %690 = vmatprep.mubr.bf16.mxu0 0
        %691 = vmatmul.mubr.bf16.gmra.mrb[0].mxu0 %v550
        %v692 = vpop.f32.mrb[0].mxu0
        %v693 = vadd.f32 0.0, %v692
        %v694 = vpop.f32.mrb[0].mxu0
        %v695 = vpop.f32.mrb[0].mxu0
        %v696 = vadd.f32 0.0, %v695
        %v697 = vpop.f32.mrb[0].mxu0
        %698 = vmatprep.mubr.bf16.mxu0 0
        %699 = vmatmul.mubr.bf16.gmra.mrb[0].mxu0 %v551
        %v700 = vpop.f32.mrb[0].mxu0
        %v701 = vadd.f32 0.0, %v700
        %v702 = vpop.f32.mrb[0].mxu0
        %v703 = vpop.f32.mrb[0].mxu0
        %v704 = vadd.f32 0.0, %v703
        %v705 = vpop.f32.mrb[0].mxu0
        %706 = vmatprep.mubr.bf16.mxu0 0
        %707 = vmatmul.mubr.bf16.gmra.mrb[0].mxu0 %v552
        %v708 = vpop.f32.mrb[0].mxu0
        %v709 = vadd.f32 0.0, %v708
        %v710 = vpop.f32.mrb[0].mxu0
        %v711 = vpop.f32.mrb[0].mxu0
        %v712 = vadd.f32 0.0, %v711
        %v713 = vpop.f32.mrb[0].mxu0
        %714 = vmatprep.mubr.bf16.mxu0 0
        %715 = vmatmul.mubr.bf16.gmra.mrb[0].mxu0 %v553
        %v716 = vpop.f32.mrb[0].mxu0
        %v717 = vadd.f32 0.0, %v716
        %v718 = vpop.f32.mrb[0].mxu0
        %v719 = vpop.f32.mrb[0].mxu0
        %v720 = vadd.f32 0.0, %v719
        %v721 = vpop.f32.mrb[0].mxu0
        %722 = vmatprep.mubr.bf16.mxu0 0
        %723 = vmatmul.mubr.bf16.gmra.mrb[0].mxu0 %v554
        %v724 = vpop.f32.mrb[0].mxu0
        %v725 = vadd.f32 0.0, %v724
        %v726 = vpop.f32.mrb[0].mxu0
        %v727 = vpop.f32.mrb[0].mxu0
        %v728 = vadd.f32 0.0, %v727
        %v729 = vpop.f32.mrb[0].mxu0
        %730 = vmatprep.mubr.bf16.mxu0 0
        %731 = vmatmul.mubr.bf16.gmra.mrb[0].mxu0 %v555
        %v732 = vpop.f32.mrb[0].mxu0
        %v733 = vadd.f32 0.0, %v732
        %v734 = vpop.f32.mrb[0].mxu0
        %v735 = vpop.f32.mrb[0].mxu0
        %v736 = vadd.f32 0.0, %v735
        %v737 = vpop.f32.mrb[0].mxu0
        %738 = vmatprep.mubr.bf16.mxu0 0
        %739 = vmatmul.mubr.bf16.gmra.mrb[0].mxu0 %v556
        %v740 = vpop.f32.mrb[0].mxu0
        %v741 = vadd.f32 0.0, %v740
        %v742 = vpop.f32.mrb[0].mxu0
        %v743 = vpop.f32.mrb[0].mxu0
        %v744 = vadd.f32 0.0, %v743
        %v745 = vpop.f32.mrb[0].mxu0
        %746 = vmatprep.mubr.bf16.mxu0 0
        %747 = vmatmul.mubr.bf16.gmra.mrb[0].mxu0 %v557
        %v748 = vpop.f32.mrb[0].mxu0
        %v749 = vadd.f32 0.0, %v748
        %v750 = vpop.f32.mrb[0].mxu0
        %v751 = vpop.f32.mrb[0].mxu0
        %v752 = vadd.f32 0.0, %v751
        %v753 = vpop.f32.mrb[0].mxu0
        %754 = vmatprep.mubr.bf16.mxu0 0
        %755 = vmatmul.mubr.bf16.gmra.mrb[0].mxu0 %v558
        %v756 = vpop.f32.mrb[0].mxu0
        %v757 = vadd.f32 0.0, %v756
        %v758 = vpop.f32.mrb[0].mxu0
        %v759 = vpop.f32.mrb[0].mxu0
        %v760 = vadd.f32 0.0, %v759
        %v761 = vpop.f32.mrb[0].mxu0
        %762 = vmatprep.mubr.bf16.mxu0 0
        %763 = vmatmul.mubr.bf16.gmra.mrb[0].mxu0 %v559
        %v764 = vpop.f32.mrb[0].mxu0
        %v765 = vadd.f32 0.0, %v764
        %v766 = vpop.f32.mrb[0].mxu0
        %v767 = vpop.f32.mrb[0].mxu0
        %v768 = vadd.f32 0.0, %v767
        %v769 = vpop.f32.mrb[0].mxu0
        %770 = vmatprep.mubr.bf16.mxu0 0
        %771 = vmatmul.mubr.bf16.gmra.mrb[0].mxu0 %v560
        %v772 = vpop.f32.mrb[0].mxu0
        %v773 = vadd.f32 0.0, %v772
        %v774 = vpop.f32.mrb[0].mxu0
        %v775 = vpop.f32.mrb[0].mxu0
        %v776 = vadd.f32 0.0, %v775
        %v777 = vpop.f32.mrb[0].mxu0
        %778 = vmatprep.mubr.bf16.mxu0 0
        %779 = vmatmul.mubr.bf16.gmra.mrb[0].mxu0 %v561
        %v780 = vpop.f32.mrb[0].mxu0
        %v781 = vadd.f32 0.0, %v780
        %v782 = vpop.f32.mrb[0].mxu0
        %v783 = vpop.f32.mrb[0].mxu0
        %v784 = vadd.f32 0.0, %v783
        %v785 = vpop.f32.mrb[0].mxu0
        %786 = vdwg.mxu0
        %v787 = vld [vmem:[%s2] sm:$0x1]
        %v789 = vlaneseq
        %v790 = vshrl.u32 %v789, 7
        %v791 = vsub.s32 0, %v790
        %v792 = vrot.slane %v787, %v791
        %v794 = vmul.f32 %v661, %v792
        %v795 = vmul.f32 %v664, %v792
        %v796 = vmul.f32 %v669, %v792
        %v797 = vmul.f32 %v672, %v792
        %v798 = vmul.f32 %v677, %v792
        %v799 = vmul.f32 %v680, %v792
        %v800 = vmul.f32 %v685, %v792
        %v801 = vmul.f32 %v688, %v792
        %v802 = vmul.f32 %v693, %v792
        %v803 = vmul.f32 %v696, %v792
        %v804 = vmul.f32 %v701, %v792
        %v805 = vmul.f32 %v704, %v792
        %v806 = vmul.f32 %v709, %v792
        %v807 = vmul.f32 %v712, %v792
        %v808 = vmul.f32 %v717, %v792
        %v809 = vmul.f32 %v720, %v792
        %v810 = vmul.f32 %v725, %v792
        %v811 = vmul.f32 %v728, %v792
        %v812 = vmul.f32 %v733, %v792
        %v813 = vmul.f32 %v736, %v792
        %v814 = vmul.f32 %v741, %v792
        %v815 = vmul.f32 %v744, %v792
        %v816 = vmul.f32 %v749, %v792
        %v817 = vmul.f32 %v752, %v792
        %v818 = vmul.f32 %v757, %v792
        %v819 = vmul.f32 %v760, %v792
        %v820 = vmul.f32 %v765, %v792
        %v821 = vmul.f32 %v768, %v792
        %v822 = vmul.f32 %v773, %v792
        %v823 = vmul.f32 %v776, %v792
        %v824 = vmul.f32 %v781, %v792
        %v825 = vmul.f32 %v784, %v792
        %v826 = vld [vmem:[%s3] sm:$0x1]
        %v828 = vlaneseq
        %v829 = vshrl.u32 %v828, 7
        %v830 = vsub.s32 0, %v829
        %v831 = vrot.slane %v826, %v830
        %v833 = vadd.f32 %v794, %v831
        %v834 = vadd.f32 %v795, %v831
        %v835 = vadd.f32 %v796, %v831
        %v836 = vadd.f32 %v797, %v831
        %v837 = vadd.f32 %v798, %v831
        %v838 = vadd.f32 %v799, %v831
        %v839 = vadd.f32 %v800, %v831
        %v840 = vadd.f32 %v801, %v831
        %v841 = vadd.f32 %v802, %v831
        %v842 = vadd.f32 %v803, %v831
        %v843 = vadd.f32 %v804, %v831
        %v844 = vadd.f32 %v805, %v831
        %v845 = vadd.f32 %v806, %v831
        %v846 = vadd.f32 %v807, %v831
        %v847 = vadd.f32 %v808, %v831
        %v848 = vadd.f32 %v809, %v831
        %v849 = vadd.f32 %v810, %v831
        %v850 = vadd.f32 %v811, %v831
        %v851 = vadd.f32 %v812, %v831
        %v852 = vadd.f32 %v813, %v831
        %v853 = vadd.f32 %v814, %v831
        %v854 = vadd.f32 %v815, %v831
        %v855 = vadd.f32 %v816, %v831
        %v856 = vadd.f32 %v817, %v831
        %v857 = vadd.f32 %v818, %v831
        %v858 = vadd.f32 %v819, %v831
        %v859 = vadd.f32 %v820, %v831
        %v860 = vadd.f32 %v821, %v831
        %v861 = vadd.f32 %v822, %v831
        %v862 = vadd.f32 %v823, %v831
        %v863 = vadd.f32 %v824, %v831
        %v864 = vadd.f32 %v825, %v831
        %v865 = vmax.f32 %v833, 0.0
        %v866 = vmax.f32 %v834, 0.0
        %v867 = vmax.f32 %v835, 0.0
        %v868 = vmax.f32 %v836, 0.0
        %v869 = vmax.f32 %v837, 0.0
        %v870 = vmax.f32 %v838, 0.0
        %v871 = vmax.f32 %v839, 0.0
        %v872 = vmax.f32 %v840, 0.0
        %v873 = vmax.f32 %v841, 0.0
        %v874 = vmax.f32 %v842, 0.0
        %v875 = vmax.f32 %v843, 0.0
        %v876 = vmax.f32 %v844, 0.0
        %v877 = vmax.f32 %v845, 0.0
        %v878 = vmax.f32 %v846, 0.0
        %v879 = vmax.f32 %v847, 0.0
        %v880 = vmax.f32 %v848, 0.0
        %v881 = vmax.f32 %v849, 0.0
        %v882 = vmax.f32 %v850, 0.0
        %v883 = vmax.f32 %v851, 0.0
        %v884 = vmax.f32 %v852, 0.0
        %v885 = vmax.f32 %v853, 0.0
        %v886 = vmax.f32 %v854, 0.0
        %v887 = vmax.f32 %v855, 0.0
        %v888 = vmax.f32 %v856, 0.0
        %v889 = vmax.f32 %v857, 0.0
        %v890 = vmax.f32 %v858, 0.0
        %v891 = vmax.f32 %v859, 0.0
        %v892 = vmax.f32 %v860, 0.0
        %v893 = vmax.f32 %v861, 0.0
        %v894 = vmax.f32 %v862, 0.0
        %v895 = vmax.f32 %v863, 0.0
        %v896 = vmax.f32 %v864, 0.0
        %v897 = vpack.c.bf16 %v866, %v865
        %v898 = vpack.c.bf16 %v868, %v867
        %v899 = vpack.c.bf16 %v870, %v869
        %v900 = vpack.c.bf16 %v872, %v871
        %v901 = vpack.c.bf16 %v874, %v873
        %v902 = vpack.c.bf16 %v876, %v875
        %v903 = vpack.c.bf16 %v878, %v877
        %v904 = vpack.c.bf16 %v880, %v879
        %v905 = vpack.c.bf16 %v882, %v881
        %v906 = vpack.c.bf16 %v884, %v883
        %v907 = vpack.c.bf16 %v886, %v885
        %v908 = vpack.c.bf16 %v888, %v887
        %v909 = vpack.c.bf16 %v890, %v889
        %v910 = vpack.c.bf16 %v892, %v891
        %v911 = vpack.c.bf16 %v894, %v893
        %v912 = vpack.c.bf16 %v896, %v895
        %v914 = vshrl.u32 %v897, 16
        %v916 = vrot.slane %v914, 7
        %v917 = vshll.u32 %v897, 16
        %v919 = vor.u32 %v916, %v917
        %v921 = vshrl.u32 %v898, 16
        %v923 = vrot.slane %v921, 7
        %v924 = vshll.u32 %v898, 16
        %v926 = vor.u32 %v923, %v924
        %v928 = vshrl.u32 %v899, 16
        %v930 = vrot.slane %v928, 7
        %v931 = vshll.u32 %v899, 16
        %v933 = vor.u32 %v930, %v931
        %v935 = vshrl.u32 %v900, 16
        %v937 = vrot.slane %v935, 7
        %v938 = vshll.u32 %v900, 16
        %v940 = vor.u32 %v937, %v938
        %v942 = vshrl.u32 %v901, 16
        %v944 = vrot.slane %v942, 7
        %v945 = vshll.u32 %v901, 16
        %v947 = vor.u32 %v944, %v945
        %v949 = vshrl.u32 %v902, 16
        %v951 = vrot.slane %v949, 7
        %v952 = vshll.u32 %v902, 16
        %v954 = vor.u32 %v951, %v952
        %v956 = vshrl.u32 %v903, 16
        %v958 = vrot.slane %v956, 7
        %v959 = vshll.u32 %v903, 16
        %v961 = vor.u32 %v958, %v959
        %v963 = vshrl.u32 %v904, 16
        %v965 = vrot.slane %v963, 7
        %v966 = vshll.u32 %v904, 16
        %v968 = vor.u32 %v965, %v966
        %v970 = vshrl.u32 %v905, 16
        %v972 = vrot.slane %v970, 7
        %v973 = vshll.u32 %v905, 16
        %v975 = vor.u32 %v972, %v973
        %v977 = vshrl.u32 %v906, 16
        %v979 = vrot.slane %v977, 7
        %v980 = vshll.u32 %v906, 16
        %v982 = vor.u32 %v979, %v980
        %v984 = vshrl.u32 %v907, 16
        %v986 = vrot.slane %v984, 7
        %v987 = vshll.u32 %v907, 16
        %v989 = vor.u32 %v986, %v987
        %v991 = vshrl.u32 %v908, 16
        %v993 = vrot.slane %v991, 7
        %v994 = vshll.u32 %v908, 16
        %v996 = vor.u32 %v993, %v994
        %v998 = vshrl.u32 %v909, 16
        %v1000 = vrot.slane %v998, 7
        %v1001 = vshll.u32 %v909, 16
        %v1003 = vor.u32 %v1000, %v1001
        %v1005 = vshrl.u32 %v910, 16
        %v1007 = vrot.slane %v1005, 7
        %v1008 = vshll.u32 %v910, 16
        %v1010 = vor.u32 %v1007, %v1008
        %v1012 = vshrl.u32 %v911, 16
        %v1014 = vrot.slane %v1012, 7
        %v1015 = vshll.u32 %v911, 16
        %v1017 = vor.u32 %v1014, %v1015
        %v1019 = vshrl.u32 %v912, 16
        %v1021 = vrot.slane %v1019, 7
        %v1022 = vshll.u32 %v912, 16
        %v1024 = vor.u32 %v1021, %v1022
        %1025 = vrot.lane.b32.xlu0 %v919, 64
        %v1026 = vpop.permute.xlu0 %1025
        %1027 = vrot.lane.b32.xlu0 %v926, 64
        %v1028 = vpop.permute.xlu0 %1027
        %1029 = vrot.lane.b32.xlu0 %v933, 64
        %v1030 = vpop.permute.xlu0 %1029
        %1031 = vrot.lane.b32.xlu0 %v940, 64
        %v1032 = vpop.permute.xlu0 %1031
        %1033 = vrot.lane.b32.xlu0 %v947, 64
        %v1034 = vpop.permute.xlu0 %1033
        %1035 = vrot.lane.b32.xlu0 %v954, 64
        %v1036 = vpop.permute.xlu0 %1035
        %1037 = vrot.lane.b32.xlu0 %v961, 64
        %v1038 = vpop.permute.xlu0 %1037
        %1039 = vrot.lane.b32.xlu0 %v968, 64
        %v1040 = vpop.permute.xlu0 %1039
        %1041 = vrot.lane.b32.xlu0 %v975, 64
        %v1042 = vpop.permute.xlu0 %1041
        %1043 = vrot.lane.b32.xlu0 %v982, 64
        %v1044 = vpop.permute.xlu0 %1043
        %1045 = vrot.lane.b32.xlu0 %v989, 64
        %v1046 = vpop.permute.xlu0 %1045
        %1047 = vrot.lane.b32.xlu0 %v996, 64
        %v1048 = vpop.permute.xlu0 %1047
        %1049 = vrot.lane.b32.xlu0 %v1003, 64
        %v1050 = vpop.permute.xlu0 %1049
        %1051 = vrot.lane.b32.xlu0 %v1010, 64
        %v1052 = vpop.permute.xlu0 %1051
        %1053 = vrot.lane.b32.xlu0 %v1017, 64
        %v1054 = vpop.permute.xlu0 %1053
        %1055 = vrot.lane.b32.xlu0 %v1024, 64
        %v1056 = vpop.permute.xlu0 %1055
        %vm1073 = vcmask 1040384
        %vm1074 = vsmask.f32 256
        %vm1075 = vmand %vm1073, %vm1074
        %v1076 = vsel %vm1075, 0, %v1026
        %v1077 = vsel %vm1075, 0, %v1028
        %v1078 = vsel %vm1075, 0, %v1030
        %v1079 = vsel %vm1075, 0, %v1032
        %v1080 = vsel %vm1075, 0, %v1034
        %v1081 = vsel %vm1075, 0, %v1036
        %v1082 = vsel %vm1075, 0, %v1038
        %v1083 = vsel %vm1075, 0, %v1040
        %v1084 = vsel %vm1075, 0, %v1042
        %v1085 = vsel %vm1075, 0, %v1044
        %v1086 = vsel %vm1075, 0, %v1046
        %v1087 = vsel %vm1075, 0, %v1048
        %v1088 = vsel %vm1075, 0, %v1050
        %v1089 = vsel %vm1075, 0, %v1052
        %v1090 = vsel %vm1075, 0, %v1054
        %v1091 = vsel %vm1075, 0, %v1056
        %v1092 = vrot.slane %v917, 1
        %v1093 = vor.u32 %v914, %v1092
        %v1094 = vrot.slane %v924, 1
        %v1095 = vor.u32 %v921, %v1094
        %v1096 = vrot.slane %v931, 1
        %v1097 = vor.u32 %v928, %v1096
        %v1098 = vrot.slane %v938, 1
        %v1099 = vor.u32 %v935, %v1098
        %v1100 = vrot.slane %v945, 1
        %v1101 = vor.u32 %v942, %v1100
        %v1102 = vrot.slane %v952, 1
        %v1103 = vor.u32 %v949, %v1102
        %v1104 = vrot.slane %v959, 1
        %v1105 = vor.u32 %v956, %v1104
        %v1106 = vrot.slane %v966, 1
        %v1107 = vor.u32 %v963, %v1106
        %v1108 = vrot.slane %v973, 1
        %v1109 = vor.u32 %v970, %v1108
        %v1110 = vrot.slane %v980, 1
        %v1111 = vor.u32 %v977, %v1110
        %v1112 = vrot.slane %v987, 1
        %v1113 = vor.u32 %v984, %v1112
        %v1114 = vrot.slane %v994, 1
        %v1115 = vor.u32 %v991, %v1114
        %v1116 = vrot.slane %v1001, 1
        %v1117 = vor.u32 %v998, %v1116
        %v1118 = vrot.slane %v1008, 1
        %v1119 = vor.u32 %v1005, %v1118
        %v1120 = vrot.slane %v1015, 1
        %v1121 = vor.u32 %v1012, %v1120
        %v1122 = vrot.slane %v1022, 1
        %v1123 = vor.u32 %v1019, %v1122
        %vm1140 = vcmask 1047552
        %vm1141 = vsmask.f32 7424
        %vm1142 = vmand %vm1140, %vm1141
        %v1143 = vsel %vm1142, %v1093, 0
        %v1144 = vsel %vm1142, %v1095, 0
        %v1145 = vsel %vm1142, %v1097, 0
        %v1146 = vsel %vm1142, %v1099, 0
        %v1147 = vsel %vm1142, %v1101, 0
        %v1148 = vsel %vm1142, %v1103, 0
        %v1149 = vsel %vm1142, %v1105, 0
        %v1150 = vsel %vm1142, %v1107, 0
        %v1151 = vsel %vm1142, %v1109, 0
        %v1152 = vsel %vm1142, %v1111, 0
        %v1153 = vsel %vm1142, %v1113, 0
        %v1154 = vsel %vm1142, %v1115, 0
        %v1155 = vsel %vm1142, %v1117, 0
        %v1156 = vsel %vm1142, %v1119, 0
        %v1157 = vsel %vm1142, %v1121, 0
        %v1158 = vsel %vm1142, %v1123, 0
        %1175 = vrot.lane.b32.xlu0 %v1143, 64
        %v1176 = vpop.permute.xlu0 %1175
        %1177 = vrot.lane.b32.xlu0 %v1144, 64
        %v1178 = vpop.permute.xlu0 %1177
        %1179 = vrot.lane.b32.xlu0 %v1145, 64
        %v1180 = vpop.permute.xlu0 %1179
        %1181 = vrot.lane.b32.xlu0 %v1146, 64
        %v1182 = vpop.permute.xlu0 %1181
        %1183 = vrot.lane.b32.xlu0 %v1147, 64
        %v1184 = vpop.permute.xlu0 %1183
        %1185 = vrot.lane.b32.xlu0 %v1148, 64
        %v1186 = vpop.permute.xlu0 %1185
        %1187 = vrot.lane.b32.xlu0 %v1149, 64
        %v1188 = vpop.permute.xlu0 %1187
        %1189 = vrot.lane.b32.xlu0 %v1150, 64
        %v1190 = vpop.permute.xlu0 %1189
        %1191 = vrot.lane.b32.xlu0 %v1151, 64
        %v1192 = vpop.permute.xlu0 %1191
        %1193 = vrot.lane.b32.xlu0 %v1152, 64
        %v1194 = vpop.permute.xlu0 %1193
        %1195 = vrot.lane.b32.xlu0 %v1153, 64
        %v1196 = vpop.permute.xlu0 %1195
        %1197 = vrot.lane.b32.xlu0 %v1154, 64
        %v1198 = vpop.permute.xlu0 %1197
        %1199 = vrot.lane.b32.xlu0 %v1155, 64
        %v1200 = vpop.permute.xlu0 %1199
        %1201 = vrot.lane.b32.xlu0 %v1156, 64
        %v1202 = vpop.permute.xlu0 %1201
        %1203 = vrot.lane.b32.xlu0 %v1157, 64
        %v1204 = vpop.permute.xlu0 %1203
        %1205 = vrot.lane.b32.xlu0 %v1158, 64
        %v1206 = vpop.permute.xlu0 %1205
        %vm1207 = vcmask 523264
        %v1209 = vsel %vm1207, %v1076, %v897
        %v1212 = vsel %vm1207, %v1077, %v898
        %v1215 = vsel %vm1207, %v1078, %v899
        %v1218 = vsel %vm1207, %v1079, %v900
        %v1221 = vsel %vm1207, %v1080, %v901
        %v1224 = vsel %vm1207, %v1081, %v902
        %v1227 = vsel %vm1207, %v1082, %v903
        %v1230 = vsel %vm1207, %v1083, %v904
        %v1233 = vsel %vm1207, %v1084, %v905
        %v1236 = vsel %vm1207, %v1085, %v906
        %v1239 = vsel %vm1207, %v1086, %v907
        %v1242 = vsel %vm1207, %v1087, %v908
        %v1245 = vsel %vm1207, %v1088, %v909
        %v1248 = vsel %vm1207, %v1089, %v910
        %v1251 = vsel %vm1207, %v1090, %v911
        %v1254 = vsel %vm1207, %v1091, %v912
        %v1256 = vld [vmem:[%s4] sm:$0xf]
        %v1257 = vld [vmem:[%s4 + $0x4] sm:$0xf]
        %v1258 = vld [vmem:[%s4 + $0x8] sm:$0xf]
        %v1259 = vld [vmem:[%s4 + $0xc] sm:$0xf]
        %v1260 = vld [vmem:[%s4 + $0x10] sm:$0xf]
        %v1261 = vld [vmem:[%s4 + $0x14] sm:$0xf]
        %v1262 = vld [vmem:[%s4 + $0x18] sm:$0xf]
        %v1263 = vld [vmem:[%s4 + $0x1c] sm:$0xf]
        %v1264 = vld [vmem:[%s4 + $0x20] sm:$0xf]
        %v1265 = vld [vmem:[%s4 + $0x24] sm:$0xf]
        %v1266 = vld [vmem:[%s4 + $0x28] sm:$0xf]
        %v1267 = vld [vmem:[%s4 + $0x2c] sm:$0xf]
        %v1268 = vld [vmem:[%s4 + $0x30] sm:$0xf]
        %v1269 = vld [vmem:[%s4 + $0x34] sm:$0xf]
        %v1270 = vld [vmem:[%s4 + $0x38] sm:$0xf]
        %v1271 = vld [vmem:[%s4 + $0x3c] sm:$0xf]
        %v1272 = vld [vmem:[%s4 + $0x40] sm:$0xf]
        %v1273 = vld [vmem:[%s4 + $0x44] sm:$0xf]
        %v1274 = vld [vmem:[%s4 + $0x48] sm:$0xf]
        %v1275 = vld [vmem:[%s4 + $0x4c] sm:$0xf]
        %v1276 = vld [vmem:[%s4 + $0x50] sm:$0xf]
        %v1277 = vld [vmem:[%s4 + $0x54] sm:$0xf]
        %v1278 = vld [vmem:[%s4 + $0x58] sm:$0xf]
        %v1279 = vld [vmem:[%s4 + $0x5c] sm:$0xf]
        %v1304 = vunpack.c.l.b16 %v1256
        %v1305 = vunpack.c.l.b16 %v1257
        %v1306 = vunpack.c.l.b16 %v1258
        %v1307 = vunpack.c.l.b16 %v1259
        %v1308 = vunpack.c.l.b16 %v1260
        %v1309 = vunpack.c.l.b16 %v1261
        %v1310 = vunpack.c.l.b16 %v1262
        %v1311 = vunpack.c.l.b16 %v1263
        %v1312 = vunpack.c.l.b16 %v1264
        %v1313 = vunpack.c.l.b16 %v1265
        %v1314 = vunpack.c.l.b16 %v1266
        %v1315 = vunpack.c.l.b16 %v1267
        %v1316 = vunpack.c.l.b16 %v1268
        %v1317 = vunpack.c.l.b16 %v1269
        %v1318 = vunpack.c.l.b16 %v1270
        %v1319 = vunpack.c.l.b16 %v1271
        %v1320 = vunpack.c.l.b16 %v1272
        %v1321 = vunpack.c.l.b16 %v1273
        %v1322 = vunpack.c.l.b16 %v1274
        %v1323 = vunpack.c.l.b16 %v1275
        %v1324 = vunpack.c.l.b16 %v1276
        %v1325 = vunpack.c.l.b16 %v1277
        %v1326 = vunpack.c.l.b16 %v1278
        %v1327 = vunpack.c.l.b16 %v1279
        %v1328 = vpack.c.b16 %v1305, %v1304
        %v1329 = vpack.c.b16 %v1307, %v1306
        %v1330 = vpack.c.b16 %v1309, %v1308
        %v1331 = vpack.c.b16 %v1311, %v1310
        %v1332 = vpack.c.b16 %v1313, %v1312
        %v1333 = vpack.c.b16 %v1315, %v1314
        %v1334 = vpack.c.b16 %v1317, %v1316
        %v1335 = vpack.c.b16 %v1319, %v1318
        %v1336 = vpack.c.b16 %v1321, %v1320
        %v1337 = vpack.c.b16 %v1323, %v1322
        %v1338 = vpack.c.b16 %v1325, %v1324
        %v1339 = vpack.c.b16 %v1327, %v1326
        %v1353 = vsel %vm1207, %v1176, 0
        %v1356 = vsel %vm1207, %v1178, 0
        %v1359 = vsel %vm1207, %v1180, 0
        %v1362 = vsel %vm1207, %v1182, 0
        %v1365 = vsel %vm1207, %v1184, 0
        %v1368 = vsel %vm1207, %v1186, 0
        %v1371 = vsel %vm1207, %v1188, 0
        %v1374 = vsel %vm1207, %v1190, 0
        %v1377 = vsel %vm1207, %v1192, 0
        %v1380 = vsel %vm1207, %v1194, 0
        %v1383 = vsel %vm1207, %v1196, 0
        %v1386 = vsel %vm1207, %v1198, 0
        %v1389 = vsel %vm1207, %v1200, 0
        %v1392 = vsel %vm1207, %v1202, 0
        %v1395 = vsel %vm1207, %v1204, 0
        %v1398 = vsel %vm1207, %v1206, 0
        %1400 = vmatprep.subr.bf16.mxu0 0
        %1401 = vmatpush1.bf16.msra.mxu0 %v1328
        %1402 = vmatprep.subr.bf16.mxu0 0
        %1403 = vmatpush1.bf16.msra.mxu0 %v1329
        %1404 = vmatprep.subr.bf16.mxu0 0
        %1405 = vmatpush1.bf16.msra.mxu0 %v1330
        %1406 = vmatprep.subr.bf16.mxu0 0
        %1407 = vmatpush1.bf16.msra.mxu0 %v1331
        %1408 = vmatprep.subr.bf16.mxu0 0
        %1409 = vmatpush1.bf16.msra.mxu0 %v1332
        %1410 = vmatprep.subr.bf16.mxu0 0
        %1411 = vmatpush1.bf16.msra.mxu0 %v1333
        %1412 = vmatprep.subr.bf16.mxu0 0
        %1413 = vmatpush1.bf16.msra.mxu0 %v1334
        %1414 = vmatprep.subr.bf16.mxu0 0
        %1415 = vmatpush1.bf16.msra.mxu0 %v1335
        %1416 = vmatprep.subr.bf16.mxu0 0
        %1417 = vmatpush1.bf16.msra.mxu0 %v1336
        %1418 = vmatprep.subr.bf16.mxu0 0
        %1419 = vmatpush1.bf16.msra.mxu0 %v1337
        %1420 = vmatprep.subr.bf16.mxu0 0
        %1421 = vmatpush1.bf16.msra.mxu0 %v1338
        %1422 = vmatprep.subr.bf16.mxu0 0
        %1423 = vmatpush1.bf16.msra.mxu0 %v1339
        %1424 = vmatprep.subr.bf16.mxu0 0
        %1425 = vmatpush1.bf16.msra.mxu0 0
        %1426 = vmatprep.subr.bf16.mxu0 0
        %1427 = vmatpush1.bf16.msra.mxu0 0
        %1428 = vmatprep.subr.bf16.mxu0 0
        %1429 = vmatpush1.bf16.msra.mxu0 0
        %1430 = vmatprep.subr.bf16.mxu0 0
        %1431 = vmatpush1.bf16.msra.mxu0 0
        %1432 = vmatprep.mubr.bf16.mxu0 %v1353
        %1433 = vmatmul.mubr.bf16.gmra.mrb[0].mxu0 %v1209
        %v1434 = vpop.f32.mrb[0].mxu0
        %v1435 = vadd.f32 0.0, %v1434
        %v1436 = vpop.f32.mrb[0].mxu0
        %v1437 = vpop.f32.mrb[0].mxu0
        %v1438 = vadd.f32 0.0, %v1437
        %v1439 = vpop.f32.mrb[0].mxu0
        %1440 = vmatprep.mubr.bf16.mxu0 %v1356
        %1441 = vmatmul.mubr.bf16.gmra.mrb[0].mxu0 %v1212
        %v1442 = vpop.f32.mrb[0].mxu0
        %v1443 = vadd.f32 0.0, %v1442
        %v1444 = vpop.f32.mrb[0].mxu0
        %v1445 = vpop.f32.mrb[0].mxu0
        %v1446 = vadd.f32 0.0, %v1445
        %v1447 = vpop.f32.mrb[0].mxu0
        %1448 = vmatprep.mubr.bf16.mxu0 %v1359
        %1449 = vmatmul.mubr.bf16.gmra.mrb[0].mxu0 %v1215
        %v1450 = vpop.f32.mrb[0].mxu0
        %v1451 = vadd.f32 0.0, %v1450
        %v1452 = vpop.f32.mrb[0].mxu0
        %v1453 = vpop.f32.mrb[0].mxu0
        %v1454 = vadd.f32 0.0, %v1453
        %v1455 = vpop.f32.mrb[0].mxu0
        %1456 = vmatprep.mubr.bf16.mxu0 %v1362
        %1457 = vmatmul.mubr.bf16.gmra.mrb[0].mxu0 %v1218
        %v1458 = vpop.f32.mrb[0].mxu0
        %v1459 = vadd.f32 0.0, %v1458
        %v1460 = vpop.f32.mrb[0].mxu0
        %v1461 = vpop.f32.mrb[0].mxu0
        %v1462 = vadd.f32 0.0, %v1461
        %v1463 = vpop.f32.mrb[0].mxu0
        %1464 = vmatprep.mubr.bf16.mxu0 %v1365
        %1465 = vmatmul.mubr.bf16.gmra.mrb[0].mxu0 %v1221
        %v1466 = vpop.f32.mrb[0].mxu0
        %v1467 = vadd.f32 0.0, %v1466
        %v1468 = vpop.f32.mrb[0].mxu0
        %v1469 = vpop.f32.mrb[0].mxu0
        %v1470 = vadd.f32 0.0, %v1469
        %v1471 = vpop.f32.mrb[0].mxu0
        %1472 = vmatprep.mubr.bf16.mxu0 %v1368
        %1473 = vmatmul.mubr.bf16.gmra.mrb[0].mxu0 %v1224
        %v1474 = vpop.f32.mrb[0].mxu0
        %v1475 = vadd.f32 0.0, %v1474
        %v1476 = vpop.f32.mrb[0].mxu0
        %v1477 = vpop.f32.mrb[0].mxu0
        %v1478 = vadd.f32 0.0, %v1477
        %v1479 = vpop.f32.mrb[0].mxu0
        %1480 = vmatprep.mubr.bf16.mxu0 %v1371
        %1481 = vmatmul.mubr.bf16.gmra.mrb[0].mxu0 %v1227
        %v1482 = vpop.f32.mrb[0].mxu0
        %v1483 = vadd.f32 0.0, %v1482
        %v1484 = vpop.f32.mrb[0].mxu0
        %v1485 = vpop.f32.mrb[0].mxu0
        %v1486 = vadd.f32 0.0, %v1485
        %v1487 = vpop.f32.mrb[0].mxu0
        %1488 = vmatprep.mubr.bf16.mxu0 %v1374
        %1489 = vmatmul.mubr.bf16.gmra.mrb[0].mxu0 %v1230
        %v1490 = vpop.f32.mrb[0].mxu0
        %v1491 = vadd.f32 0.0, %v1490
        %v1492 = vpop.f32.mrb[0].mxu0
        %v1493 = vpop.f32.mrb[0].mxu0
        %v1494 = vadd.f32 0.0, %v1493
        %v1495 = vpop.f32.mrb[0].mxu0
        %1496 = vmatprep.mubr.bf16.mxu0 %v1377
        %1497 = vmatmul.mubr.bf16.gmra.mrb[0].mxu0 %v1233
        %v1498 = vpop.f32.mrb[0].mxu0
        %v1499 = vadd.f32 0.0, %v1498
        %v1500 = vpop.f32.mrb[0].mxu0
        %v1501 = vpop.f32.mrb[0].mxu0
        %v1502 = vadd.f32 0.0, %v1501
        %v1503 = vpop.f32.mrb[0].mxu0
        %1504 = vmatprep.mubr.bf16.mxu0 %v1380
        %1505 = vmatmul.mubr.bf16.gmra.mrb[0].mxu0 %v1236
        %v1506 = vpop.f32.mrb[0].mxu0
        %v1507 = vadd.f32 0.0, %v1506
        %v1508 = vpop.f32.mrb[0].mxu0
        %v1509 = vpop.f32.mrb[0].mxu0
        %v1510 = vadd.f32 0.0, %v1509
        %v1511 = vpop.f32.mrb[0].mxu0
        %1512 = vmatprep.mubr.bf16.mxu0 %v1383
        %1513 = vmatmul.mubr.bf16.gmra.mrb[0].mxu0 %v1239
        %v1514 = vpop.f32.mrb[0].mxu0
        %v1515 = vadd.f32 0.0, %v1514
        %v1516 = vpop.f32.mrb[0].mxu0
        %v1517 = vpop.f32.mrb[0].mxu0
        %v1518 = vadd.f32 0.0, %v1517
        %v1519 = vpop.f32.mrb[0].mxu0
        %1520 = vmatprep.mubr.bf16.mxu0 %v1386
        %1521 = vmatmul.mubr.bf16.gmra.mrb[0].mxu0 %v1242
        %v1522 = vpop.f32.mrb[0].mxu0
        %v1523 = vadd.f32 0.0, %v1522
        %v1524 = vpop.f32.mrb[0].mxu0
        %v1525 = vpop.f32.mrb[0].mxu0
        %v1526 = vadd.f32 0.0, %v1525
        %v1527 = vpop.f32.mrb[0].mxu0
        %1528 = vmatprep.mubr.bf16.mxu0 %v1389
        %1529 = vmatmul.mubr.bf16.gmra.mrb[0].mxu0 %v1245
        %v1530 = vpop.f32.mrb[0].mxu0
        %v1531 = vadd.f32 0.0, %v1530
        %v1532 = vpop.f32.mrb[0].mxu0
        %v1533 = vpop.f32.mrb[0].mxu0
        %v1534 = vadd.f32 0.0, %v1533
        %v1535 = vpop.f32.mrb[0].mxu0
        %1536 = vmatprep.mubr.bf16.mxu0 %v1392
        %1537 = vmatmul.mubr.bf16.gmra.mrb[0].mxu0 %v1248
        %v1538 = vpop.f32.mrb[0].mxu0
        %v1539 = vadd.f32 0.0, %v1538
        %v1540 = vpop.f32.mrb[0].mxu0
        %v1541 = vpop.f32.mrb[0].mxu0
        %v1542 = vadd.f32 0.0, %v1541
        %v1543 = vpop.f32.mrb[0].mxu0
        %1544 = vmatprep.mubr.bf16.mxu0 %v1395
        %1545 = vmatmul.mubr.bf16.gmra.mrb[0].mxu0 %v1251
        %v1546 = vpop.f32.mrb[0].mxu0
        %v1547 = vadd.f32 0.0, %v1546
        %v1548 = vpop.f32.mrb[0].mxu0
        %v1549 = vpop.f32.mrb[0].mxu0
        %v1550 = vadd.f32 0.0, %v1549
        %v1551 = vpop.f32.mrb[0].mxu0
        %1552 = vmatprep.mubr.bf16.mxu0 %v1398
        %1553 = vmatmul.mubr.bf16.gmra.mrb[0].mxu0 %v1254
        %v1554 = vpop.f32.mrb[0].mxu0
        %v1555 = vadd.f32 0.0, %v1554
        %v1556 = vpop.f32.mrb[0].mxu0
        %v1557 = vpop.f32.mrb[0].mxu0
        %v1558 = vadd.f32 0.0, %v1557
        %v1559 = vpop.f32.mrb[0].mxu0
        %1560 = vdwg.mxu0
        %v1561 = vld [vmem:[%s5] sm:$0x1]
        %v1563 = vlaneseq
        %v1564 = vshrl.u32 %v1563, 7
        %v1565 = vsub.s32 0, %v1564
        %v1566 = vrot.slane %v1561, %v1565
        %v1568 = vmul.f32 %v1435, %v1566
        %v1569 = vmul.f32 %v1438, %v1566
        %v1570 = vmul.f32 %v1443, %v1566
        %v1571 = vmul.f32 %v1446, %v1566
        %v1572 = vmul.f32 %v1451, %v1566
        %v1573 = vmul.f32 %v1454, %v1566
        %v1574 = vmul.f32 %v1459, %v1566
        %v1575 = vmul.f32 %v1462, %v1566
        %v1576 = vmul.f32 %v1467, %v1566
        %v1577 = vmul.f32 %v1470, %v1566
        %v1578 = vmul.f32 %v1475, %v1566
        %v1579 = vmul.f32 %v1478, %v1566
        %v1580 = vmul.f32 %v1483, %v1566
        %v1581 = vmul.f32 %v1486, %v1566
        %v1582 = vmul.f32 %v1491, %v1566
        %v1583 = vmul.f32 %v1494, %v1566
        %v1584 = vmul.f32 %v1499, %v1566
        %v1585 = vmul.f32 %v1502, %v1566
        %v1586 = vmul.f32 %v1507, %v1566
        %v1587 = vmul.f32 %v1510, %v1566
        %v1588 = vmul.f32 %v1515, %v1566
        %v1589 = vmul.f32 %v1518, %v1566
        %v1590 = vmul.f32 %v1523, %v1566
        %v1591 = vmul.f32 %v1526, %v1566
        %v1592 = vmul.f32 %v1531, %v1566
        %v1593 = vmul.f32 %v1534, %v1566
        %v1594 = vmul.f32 %v1539, %v1566
        %v1595 = vmul.f32 %v1542, %v1566
        %v1596 = vmul.f32 %v1547, %v1566
        %v1597 = vmul.f32 %v1550, %v1566
        %v1598 = vmul.f32 %v1555, %v1566
        %v1599 = vmul.f32 %v1558, %v1566
        %v1600 = vld [vmem:[%s6] sm:$0x1]
        %v1602 = vlaneseq
        %v1603 = vshrl.u32 %v1602, 7
        %v1604 = vsub.s32 0, %v1603
        %v1605 = vrot.slane %v1600, %v1604
        %v1607 = vadd.f32 %v1568, %v1605
        %v1608 = vadd.f32 %v1569, %v1605
        %v1609 = vadd.f32 %v1570, %v1605
        %v1610 = vadd.f32 %v1571, %v1605
        %v1611 = vadd.f32 %v1572, %v1605
        %v1612 = vadd.f32 %v1573, %v1605
        %v1613 = vadd.f32 %v1574, %v1605
        %v1614 = vadd.f32 %v1575, %v1605
        %v1615 = vadd.f32 %v1576, %v1605
        %v1616 = vadd.f32 %v1577, %v1605
        %v1617 = vadd.f32 %v1578, %v1605
        %v1618 = vadd.f32 %v1579, %v1605
        %v1619 = vadd.f32 %v1580, %v1605
        %v1620 = vadd.f32 %v1581, %v1605
        %v1621 = vadd.f32 %v1582, %v1605
        %v1622 = vadd.f32 %v1583, %v1605
        %v1623 = vadd.f32 %v1584, %v1605
        %v1624 = vadd.f32 %v1585, %v1605
        %v1625 = vadd.f32 %v1586, %v1605
        %v1626 = vadd.f32 %v1587, %v1605
        %v1627 = vadd.f32 %v1588, %v1605
        %v1628 = vadd.f32 %v1589, %v1605
        %v1629 = vadd.f32 %v1590, %v1605
        %v1630 = vadd.f32 %v1591, %v1605
        %v1631 = vadd.f32 %v1592, %v1605
        %v1632 = vadd.f32 %v1593, %v1605
        %v1633 = vadd.f32 %v1594, %v1605
        %v1634 = vadd.f32 %v1595, %v1605
        %v1635 = vadd.f32 %v1596, %v1605
        %v1636 = vadd.f32 %v1597, %v1605
        %v1637 = vadd.f32 %v1598, %v1605
        %v1638 = vadd.f32 %v1599, %v1605
        %v1639 = vmax.f32 %v1607, 0.0
        %v1640 = vmax.f32 %v1608, 0.0
        %v1641 = vmax.f32 %v1609, 0.0
        %v1642 = vmax.f32 %v1610, 0.0
        %v1643 = vmax.f32 %v1611, 0.0
        %v1644 = vmax.f32 %v1612, 0.0
        %v1645 = vmax.f32 %v1613, 0.0
        %v1646 = vmax.f32 %v1614, 0.0
        %v1647 = vmax.f32 %v1615, 0.0
        %v1648 = vmax.f32 %v1616, 0.0
        %v1649 = vmax.f32 %v1617, 0.0
        %v1650 = vmax.f32 %v1618, 0.0
        %v1651 = vmax.f32 %v1619, 0.0
        %v1652 = vmax.f32 %v1620, 0.0
        %v1653 = vmax.f32 %v1621, 0.0
        %v1654 = vmax.f32 %v1622, 0.0
        %v1655 = vmax.f32 %v1623, 0.0
        %v1656 = vmax.f32 %v1624, 0.0
        %v1657 = vmax.f32 %v1625, 0.0
        %v1658 = vmax.f32 %v1626, 0.0
        %v1659 = vmax.f32 %v1627, 0.0
        %v1660 = vmax.f32 %v1628, 0.0
        %v1661 = vmax.f32 %v1629, 0.0
        %v1662 = vmax.f32 %v1630, 0.0
        %v1663 = vmax.f32 %v1631, 0.0
        %v1664 = vmax.f32 %v1632, 0.0
        %v1665 = vmax.f32 %v1633, 0.0
        %v1666 = vmax.f32 %v1634, 0.0
        %v1667 = vmax.f32 %v1635, 0.0
        %v1668 = vmax.f32 %v1636, 0.0
        %v1669 = vmax.f32 %v1637, 0.0
        %v1670 = vmax.f32 %v1638, 0.0
        %v1671 = vpack.c.bf16 %v1640, %v1639
        %v1672 = vpack.c.bf16 %v1642, %v1641
        %v1673 = vpack.c.bf16 %v1644, %v1643
        %v1674 = vpack.c.bf16 %v1646, %v1645
        %v1675 = vpack.c.bf16 %v1648, %v1647
        %v1676 = vpack.c.bf16 %v1650, %v1649
        %v1677 = vpack.c.bf16 %v1652, %v1651
        %v1678 = vpack.c.bf16 %v1654, %v1653
        %v1679 = vpack.c.bf16 %v1656, %v1655
        %v1680 = vpack.c.bf16 %v1658, %v1657
        %v1681 = vpack.c.bf16 %v1660, %v1659
        %v1682 = vpack.c.bf16 %v1662, %v1661
        %v1683 = vpack.c.bf16 %v1664, %v1663
        %v1684 = vpack.c.bf16 %v1666, %v1665
        %v1685 = vpack.c.bf16 %v1668, %v1667
        %v1686 = vpack.c.bf16 %v1670, %v1669
        %1703 = vrot.lane.b32.xlu0 %v1671, 64
        %v1704 = vpop.permute.xlu0 %1703
        %1705 = vrot.lane.b32.xlu0 %v1672, 64
        %v1706 = vpop.permute.xlu0 %1705
        %1707 = vrot.lane.b32.xlu0 %v1673, 64
        %v1708 = vpop.permute.xlu0 %1707
        %1709 = vrot.lane.b32.xlu0 %v1674, 64
        %v1710 = vpop.permute.xlu0 %1709
        %1711 = vrot.lane.b32.xlu0 %v1675, 64
        %v1712 = vpop.permute.xlu0 %1711
        %1713 = vrot.lane.b32.xlu0 %v1676, 64
        %v1714 = vpop.permute.xlu0 %1713
        %1715 = vrot.lane.b32.xlu0 %v1677, 64
        %v1716 = vpop.permute.xlu0 %1715
        %1717 = vrot.lane.b32.xlu0 %v1678, 64
        %v1718 = vpop.permute.xlu0 %1717
        %1719 = vrot.lane.b32.xlu0 %v1679, 64
        %v1720 = vpop.permute.xlu0 %1719
        %1721 = vrot.lane.b32.xlu0 %v1680, 64
        %v1722 = vpop.permute.xlu0 %1721
        %1723 = vrot.lane.b32.xlu0 %v1681, 64
        %v1724 = vpop.permute.xlu0 %1723
        %1725 = vrot.lane.b32.xlu0 %v1682, 64
        %v1726 = vpop.permute.xlu0 %1725
        %1727 = vrot.lane.b32.xlu0 %v1683, 64
        %v1728 = vpop.permute.xlu0 %1727
        %1729 = vrot.lane.b32.xlu0 %v1684, 64
        %v1730 = vpop.permute.xlu0 %1729
        %1731 = vrot.lane.b32.xlu0 %v1685, 64
        %v1732 = vpop.permute.xlu0 %1731
        %1733 = vrot.lane.b32.xlu0 %v1686, 64
        %v1734 = vpop.permute.xlu0 %1733
        %v1737 = vsel %vm1207, 0, %v1704
        %v1741 = vsel %vm1207, %v1671, %v1706
        %v1745 = vsel %vm1207, %v1672, %v1708
        %v1749 = vsel %vm1207, %v1673, %v1710
        %v1753 = vsel %vm1207, %v1674, %v1712
        %v1757 = vsel %vm1207, %v1675, %v1714
        %v1761 = vsel %vm1207, %v1676, %v1716
        %v1765 = vsel %vm1207, %v1677, %v1718
        %v1769 = vsel %vm1207, %v1678, %v1720
        %v1773 = vsel %vm1207, %v1679, %v1722
        %v1777 = vsel %vm1207, %v1680, %v1724
        %v1781 = vsel %vm1207, %v1681, %v1726
        %v1785 = vsel %vm1207, %v1682, %v1728
        %v1789 = vsel %vm1207, %v1683, %v1730
        %v1793 = vsel %vm1207, %v1684, %v1732
        %v1797 = vsel %vm1207, %v1685, %v1734
        %v1799 = vld [vmem:[%s7] sm:$0xf]
        %v1800 = vld [vmem:[%s7 + $0x4] sm:$0xf]
        %v1801 = vld [vmem:[%s7 + $0x8] sm:$0xf]
        %v1802 = vld [vmem:[%s7 + $0xc] sm:$0xf]
        %v1803 = vld [vmem:[%s7 + $0x10] sm:$0xf]
        %v1804 = vld [vmem:[%s7 + $0x14] sm:$0xf]
        %v1805 = vld [vmem:[%s7 + $0x18] sm:$0xf]
        %v1806 = vld [vmem:[%s7 + $0x1c] sm:$0xf]
        %v1807 = vld [vmem:[%s7 + $0x20] sm:$0xf]
        %v1808 = vld [vmem:[%s7 + $0x24] sm:$0xf]
        %v1809 = vld [vmem:[%s7 + $0x28] sm:$0xf]
        %v1810 = vld [vmem:[%s7 + $0x2c] sm:$0xf]
        %v1811 = vld [vmem:[%s7 + $0x30] sm:$0xf]
        %v1812 = vld [vmem:[%s7 + $0x34] sm:$0xf]
        %v1813 = vld [vmem:[%s7 + $0x38] sm:$0xf]
        %v1814 = vld [vmem:[%s7 + $0x3c] sm:$0xf]
        %v1815 = vld [vmem:[%s7 + $0x40] sm:$0xf]
        %v1816 = vld [vmem:[%s7 + $0x44] sm:$0xf]
        %v1817 = vld [vmem:[%s7 + $0x48] sm:$0xf]
        %v1818 = vld [vmem:[%s7 + $0x4c] sm:$0xf]
        %v1819 = vld [vmem:[%s7 + $0x50] sm:$0xf]
        %v1820 = vld [vmem:[%s7 + $0x54] sm:$0xf]
        %v1821 = vld [vmem:[%s7 + $0x58] sm:$0xf]
        %v1822 = vld [vmem:[%s7 + $0x5c] sm:$0xf]
        %v1847 = vunpack.c.l.b16 %v1799
        %v1848 = vunpack.c.l.b16 %v1800
        %v1849 = vunpack.c.l.b16 %v1801
        %v1850 = vunpack.c.l.b16 %v1802
        %v1851 = vunpack.c.l.b16 %v1803
        %v1852 = vunpack.c.l.b16 %v1804
        %v1853 = vunpack.c.l.b16 %v1805
        %v1854 = vunpack.c.l.b16 %v1806
        %v1855 = vunpack.c.l.b16 %v1807
        %v1856 = vunpack.c.l.b16 %v1808
        %v1857 = vunpack.c.l.b16 %v1809
        %v1858 = vunpack.c.l.b16 %v1810
        %v1859 = vunpack.c.l.b16 %v1811
        %v1860 = vunpack.c.l.b16 %v1812
        %v1861 = vunpack.c.l.b16 %v1813
        %v1862 = vunpack.c.l.b16 %v1814
        %v1863 = vunpack.c.l.b16 %v1815
        %v1864 = vunpack.c.l.b16 %v1816
        %v1865 = vunpack.c.l.b16 %v1817
        %v1866 = vunpack.c.l.b16 %v1818
        %v1867 = vunpack.c.l.b16 %v1819
        %v1868 = vunpack.c.l.b16 %v1820
        %v1869 = vunpack.c.l.b16 %v1821
        %v1870 = vunpack.c.l.b16 %v1822
        %v1871 = vpack.c.b16 %v1848, %v1847
        %v1872 = vpack.c.b16 %v1850, %v1849
        %v1873 = vpack.c.b16 %v1852, %v1851
        %v1874 = vpack.c.b16 %v1854, %v1853
        %v1875 = vpack.c.b16 %v1856, %v1855
        %v1876 = vpack.c.b16 %v1858, %v1857
        %v1877 = vpack.c.b16 %v1860, %v1859
        %v1878 = vpack.c.b16 %v1862, %v1861
        %v1879 = vpack.c.b16 %v1864, %v1863
        %v1880 = vpack.c.b16 %v1866, %v1865
        %v1881 = vpack.c.b16 %v1868, %v1867
        %v1882 = vpack.c.b16 %v1870, %v1869
        %v1895 = vsel %vm1207, %v1672, 0
        %v1897 = vsel %vm1207, %v1673, 0
        %v1899 = vsel %vm1207, %v1674, 0
        %v1901 = vsel %vm1207, %v1675, 0
        %v1903 = vsel %vm1207, %v1676, 0
        %v1905 = vsel %vm1207, %v1677, 0
        %v1907 = vsel %vm1207, %v1678, 0
        %v1909 = vsel %vm1207, %v1679, 0
        %v1911 = vsel %vm1207, %v1680, 0
        %v1913 = vsel %vm1207, %v1681, 0
        %v1915 = vsel %vm1207, %v1682, 0
        %v1917 = vsel %vm1207, %v1683, 0
        %v1919 = vsel %vm1207, %v1684, 0
        %v1921 = vsel %vm1207, %v1685, 0
        %v1924 = vsel %vm1207, %v1686, 0
        %v1926 = vsel %vm1207, 0, 0
        %1928 = vmatprep.subr.bf16.mxu0 0
        %1929 = vmatpush1.bf16.msra.mxu0 %v1871
        %1930 = vmatprep.subr.bf16.mxu0 0
        %1931 = vmatpush1.bf16.msra.mxu0 %v1872
        %1932 = vmatprep.subr.bf16.mxu0 0
        %1933 = vmatpush1.bf16.msra.mxu0 %v1873
        %1934 = vmatprep.subr.bf16.mxu0 0
        %1935 = vmatpush1.bf16.msra.mxu0 %v1874
        %1936 = vmatprep.subr.bf16.mxu0 0
        %1937 = vmatpush1.bf16.msra.mxu0 %v1875
        %1938 = vmatprep.subr.bf16.mxu0 0
        %1939 = vmatpush1.bf16.msra.mxu0 %v1876
        %1940 = vmatprep.subr.bf16.mxu0 0
        %1941 = vmatpush1.bf16.msra.mxu0 %v1877
        %1942 = vmatprep.subr.bf16.mxu0 0
        %1943 = vmatpush1.bf16.msra.mxu0 %v1878
        %1944 = vmatprep.subr.bf16.mxu0 0
        %1945 = vmatpush1.bf16.msra.mxu0 %v1879
        %1946 = vmatprep.subr.bf16.mxu0 0
        %1947 = vmatpush1.bf16.msra.mxu0 %v1880
        %1948 = vmatprep.subr.bf16.mxu0 0
        %1949 = vmatpush1.bf16.msra.mxu0 %v1881
        %1950 = vmatprep.subr.bf16.mxu0 0
        %1951 = vmatpush1.bf16.msra.mxu0 %v1882
        %1952 = vmatprep.subr.bf16.mxu0 0
        %1953 = vmatpush1.bf16.msra.mxu0 0
        %1954 = vmatprep.subr.bf16.mxu0 0
        %1955 = vmatpush1.bf16.msra.mxu0 0
        %1956 = vmatprep.subr.bf16.mxu0 0
        %1957 = vmatpush1.bf16.msra.mxu0 0
        %1958 = vmatprep.subr.bf16.mxu0 0
        %1959 = vmatpush1.bf16.msra.mxu0 0
        %1960 = vmatprep.mubr.bf16.mxu0 %v1895
        %1961 = vmatmul.mubr.bf16.gmra.mrb[0].mxu0 %v1737
        %v1962 = vpop.f32.mrb[0].mxu0
        %v1963 = vadd.f32 0.0, %v1962
        %v1964 = vpop.f32.mrb[0].mxu0
        %v1965 = vpop.f32.mrb[0].mxu0
        %v1966 = vadd.f32 0.0, %v1965
        %v1967 = vpop.f32.mrb[0].mxu0
        %1968 = vmatprep.mubr.bf16.mxu0 %v1897
        %1969 = vmatmul.mubr.bf16.gmra.mrb[0].mxu0 %v1741
        %v1970 = vpop.f32.mrb[0].mxu0
        %v1971 = vadd.f32 0.0, %v1970
        %v1972 = vpop.f32.mrb[0].mxu0
        %v1973 = vpop.f32.mrb[0].mxu0
        %v1974 = vadd.f32 0.0, %v1973
        %v1975 = vpop.f32.mrb[0].mxu0
        %1976 = vmatprep.mubr.bf16.mxu0 %v1899
        %1977 = vmatmul.mubr.bf16.gmra.mrb[0].mxu0 %v1745
        %v1978 = vpop.f32.mrb[0].mxu0
        %v1979 = vadd.f32 0.0, %v1978
        %v1980 = vpop.f32.mrb[0].mxu0
        %v1981 = vpop.f32.mrb[0].mxu0
        %v1982 = vadd.f32 0.0, %v1981
        %v1983 = vpop.f32.mrb[0].mxu0
        %1984 = vmatprep.mubr.bf16.mxu0 %v1901
        %1985 = vmatmul.mubr.bf16.gmra.mrb[0].mxu0 %v1749
        %v1986 = vpop.f32.mrb[0].mxu0
        %v1987 = vadd.f32 0.0, %v1986
        %v1988 = vpop.f32.mrb[0].mxu0
        %v1989 = vpop.f32.mrb[0].mxu0
        %v1990 = vadd.f32 0.0, %v1989
        %v1991 = vpop.f32.mrb[0].mxu0
        %1992 = vmatprep.mubr.bf16.mxu0 %v1903
        %1993 = vmatmul.mubr.bf16.gmra.mrb[0].mxu0 %v1753
        %v1994 = vpop.f32.mrb[0].mxu0
        %v1995 = vadd.f32 0.0, %v1994
        %v1996 = vpop.f32.mrb[0].mxu0
        %v1997 = vpop.f32.mrb[0].mxu0
        %v1998 = vadd.f32 0.0, %v1997
        %v1999 = vpop.f32.mrb[0].mxu0
        %2000 = vmatprep.mubr.bf16.mxu0 %v1905
        %2001 = vmatmul.mubr.bf16.gmra.mrb[0].mxu0 %v1757
        %v2002 = vpop.f32.mrb[0].mxu0
        %v2003 = vadd.f32 0.0, %v2002
        %v2004 = vpop.f32.mrb[0].mxu0
        %v2005 = vpop.f32.mrb[0].mxu0
        %v2006 = vadd.f32 0.0, %v2005
        %v2007 = vpop.f32.mrb[0].mxu0
        %2008 = vmatprep.mubr.bf16.mxu0 %v1907
        %2009 = vmatmul.mubr.bf16.gmra.mrb[0].mxu0 %v1761
        %v2010 = vpop.f32.mrb[0].mxu0
        %v2011 = vadd.f32 0.0, %v2010
        %v2012 = vpop.f32.mrb[0].mxu0
        %v2013 = vpop.f32.mrb[0].mxu0
        %v2014 = vadd.f32 0.0, %v2013
        %v2015 = vpop.f32.mrb[0].mxu0
        %2016 = vmatprep.mubr.bf16.mxu0 %v1909
        %2017 = vmatmul.mubr.bf16.gmra.mrb[0].mxu0 %v1765
        %v2018 = vpop.f32.mrb[0].mxu0
        %v2019 = vadd.f32 0.0, %v2018
        %v2020 = vpop.f32.mrb[0].mxu0
        %v2021 = vpop.f32.mrb[0].mxu0
        %v2022 = vadd.f32 0.0, %v2021
        %v2023 = vpop.f32.mrb[0].mxu0
        %2024 = vmatprep.mubr.bf16.mxu0 %v1911
        %2025 = vmatmul.mubr.bf16.gmra.mrb[0].mxu0 %v1769
        %v2026 = vpop.f32.mrb[0].mxu0
        %v2027 = vadd.f32 0.0, %v2026
        %v2028 = vpop.f32.mrb[0].mxu0
        %v2029 = vpop.f32.mrb[0].mxu0
        %v2030 = vadd.f32 0.0, %v2029
        %v2031 = vpop.f32.mrb[0].mxu0
        %2032 = vmatprep.mubr.bf16.mxu0 %v1913
        %2033 = vmatmul.mubr.bf16.gmra.mrb[0].mxu0 %v1773
        %v2034 = vpop.f32.mrb[0].mxu0
        %v2035 = vadd.f32 0.0, %v2034
        %v2036 = vpop.f32.mrb[0].mxu0
        %v2037 = vpop.f32.mrb[0].mxu0
        %v2038 = vadd.f32 0.0, %v2037
        %v2039 = vpop.f32.mrb[0].mxu0
        %2040 = vmatprep.mubr.bf16.mxu0 %v1915
        %2041 = vmatmul.mubr.bf16.gmra.mrb[0].mxu0 %v1777
        %v2042 = vpop.f32.mrb[0].mxu0
        %v2043 = vadd.f32 0.0, %v2042
        %v2044 = vpop.f32.mrb[0].mxu0
        %v2045 = vpop.f32.mrb[0].mxu0
        %v2046 = vadd.f32 0.0, %v2045
        %v2047 = vpop.f32.mrb[0].mxu0
        %2048 = vmatprep.mubr.bf16.mxu0 %v1917
        %2049 = vmatmul.mubr.bf16.gmra.mrb[0].mxu0 %v1781
        %v2050 = vpop.f32.mrb[0].mxu0
        %v2051 = vadd.f32 0.0, %v2050
        %v2052 = vpop.f32.mrb[0].mxu0
        %v2053 = vpop.f32.mrb[0].mxu0
        %v2054 = vadd.f32 0.0, %v2053
        %v2055 = vpop.f32.mrb[0].mxu0
        %2056 = vmatprep.mubr.bf16.mxu0 %v1919
        %2057 = vmatmul.mubr.bf16.gmra.mrb[0].mxu0 %v1785
        %v2058 = vpop.f32.mrb[0].mxu0
        %v2059 = vadd.f32 0.0, %v2058
        %v2060 = vpop.f32.mrb[0].mxu0
        %v2061 = vpop.f32.mrb[0].mxu0
        %v2062 = vadd.f32 0.0, %v2061
        %v2063 = vpop.f32.mrb[0].mxu0
        %2064 = vmatprep.mubr.bf16.mxu0 %v1921
        %2065 = vmatmul.mubr.bf16.gmra.mrb[0].mxu0 %v1789
        %v2066 = vpop.f32.mrb[0].mxu0
        %v2067 = vadd.f32 0.0, %v2066
        %v2068 = vpop.f32.mrb[0].mxu0
        %v2069 = vpop.f32.mrb[0].mxu0
        %v2070 = vadd.f32 0.0, %v2069
        %v2071 = vpop.f32.mrb[0].mxu0
        %2072 = vmatprep.mubr.bf16.mxu0 %v1924
        %2073 = vmatmul.mubr.bf16.gmra.mrb[0].mxu0 %v1793
        %v2074 = vpop.f32.mrb[0].mxu0
        %v2075 = vadd.f32 0.0, %v2074
        %v2076 = vpop.f32.mrb[0].mxu0
        %v2077 = vpop.f32.mrb[0].mxu0
        %v2078 = vadd.f32 0.0, %v2077
        %v2079 = vpop.f32.mrb[0].mxu0
        %2080 = vmatprep.mubr.bf16.mxu0 %v1926
        %2081 = vmatmul.mubr.bf16.gmra.mrb[0].mxu0 %v1797
        %v2082 = vpop.f32.mrb[0].mxu0
        %v2083 = vadd.f32 0.0, %v2082
        %v2084 = vpop.f32.mrb[0].mxu0
        %v2085 = vpop.f32.mrb[0].mxu0
        %v2086 = vadd.f32 0.0, %v2085
        %v2087 = vpop.f32.mrb[0].mxu0
        %2088 = vdwg.mxu0
        %v2089 = vld [vmem:[%s8] sm:$0x1]
        %v2091 = vlaneseq
        %v2092 = vshrl.u32 %v2091, 7
        %v2093 = vsub.s32 0, %v2092
        %v2094 = vrot.slane %v2089, %v2093
        %v2096 = vmul.f32 %v1963, %v2094
        %v2097 = vmul.f32 %v1966, %v2094
        %v2098 = vmul.f32 %v1971, %v2094
        %v2099 = vmul.f32 %v1974, %v2094
        %v2100 = vmul.f32 %v1979, %v2094
        %v2101 = vmul.f32 %v1982, %v2094
        %v2102 = vmul.f32 %v1987, %v2094
        %v2103 = vmul.f32 %v1990, %v2094
        %v2104 = vmul.f32 %v1995, %v2094
        %v2105 = vmul.f32 %v1998, %v2094
        %v2106 = vmul.f32 %v2003, %v2094
        %v2107 = vmul.f32 %v2006, %v2094
        %v2108 = vmul.f32 %v2011, %v2094
        %v2109 = vmul.f32 %v2014, %v2094
        %v2110 = vmul.f32 %v2019, %v2094
        %v2111 = vmul.f32 %v2022, %v2094
        %v2112 = vmul.f32 %v2027, %v2094
        %v2113 = vmul.f32 %v2030, %v2094
        %v2114 = vmul.f32 %v2035, %v2094
        %v2115 = vmul.f32 %v2038, %v2094
        %v2116 = vmul.f32 %v2043, %v2094
        %v2117 = vmul.f32 %v2046, %v2094
        %v2118 = vmul.f32 %v2051, %v2094
        %v2119 = vmul.f32 %v2054, %v2094
        %v2120 = vmul.f32 %v2059, %v2094
        %v2121 = vmul.f32 %v2062, %v2094
        %v2122 = vmul.f32 %v2067, %v2094
        %v2123 = vmul.f32 %v2070, %v2094
        %v2124 = vmul.f32 %v2075, %v2094
        %v2125 = vmul.f32 %v2078, %v2094
        %v2126 = vmul.f32 %v2083, %v2094
        %v2127 = vmul.f32 %v2086, %v2094
        %v2128 = vld [vmem:[%s9] sm:$0x1]
        %v2130 = vlaneseq
        %v2131 = vshrl.u32 %v2130, 7
        %v2132 = vsub.s32 0, %v2131
        %v2133 = vrot.slane %v2128, %v2132
        %v2135 = vadd.f32 %v2096, %v2133
        %v2136 = vadd.f32 %v2097, %v2133
        %v2137 = vadd.f32 %v2098, %v2133
        %v2138 = vadd.f32 %v2099, %v2133
        %v2139 = vadd.f32 %v2100, %v2133
        %v2140 = vadd.f32 %v2101, %v2133
        %v2141 = vadd.f32 %v2102, %v2133
        %v2142 = vadd.f32 %v2103, %v2133
        %v2143 = vadd.f32 %v2104, %v2133
        %v2144 = vadd.f32 %v2105, %v2133
        %v2145 = vadd.f32 %v2106, %v2133
        %v2146 = vadd.f32 %v2107, %v2133
        %v2147 = vadd.f32 %v2108, %v2133
        %v2148 = vadd.f32 %v2109, %v2133
        %v2149 = vadd.f32 %v2110, %v2133
        %v2150 = vadd.f32 %v2111, %v2133
        %v2151 = vadd.f32 %v2112, %v2133
        %v2152 = vadd.f32 %v2113, %v2133
        %v2153 = vadd.f32 %v2114, %v2133
        %v2154 = vadd.f32 %v2115, %v2133
        %v2155 = vadd.f32 %v2116, %v2133
        %v2156 = vadd.f32 %v2117, %v2133
        %v2157 = vadd.f32 %v2118, %v2133
        %v2158 = vadd.f32 %v2119, %v2133
        %v2159 = vadd.f32 %v2120, %v2133
        %v2160 = vadd.f32 %v2121, %v2133
        %v2161 = vadd.f32 %v2122, %v2133
        %v2162 = vadd.f32 %v2123, %v2133
        %v2163 = vadd.f32 %v2124, %v2133
        %v2164 = vadd.f32 %v2125, %v2133
        %v2165 = vadd.f32 %v2126, %v2133
        %v2166 = vadd.f32 %v2127, %v2133
        %v2167 = vmax.f32 %v2135, 0.0
        %v2168 = vmax.f32 %v2136, 0.0
        %v2169 = vmax.f32 %v2137, 0.0
        %v2170 = vmax.f32 %v2138, 0.0
        %v2171 = vmax.f32 %v2139, 0.0
        %v2172 = vmax.f32 %v2140, 0.0
        %v2173 = vmax.f32 %v2141, 0.0
        %v2174 = vmax.f32 %v2142, 0.0
        %v2175 = vmax.f32 %v2143, 0.0
        %v2176 = vmax.f32 %v2144, 0.0
        %v2177 = vmax.f32 %v2145, 0.0
        %v2178 = vmax.f32 %v2146, 0.0
        %v2179 = vmax.f32 %v2147, 0.0
        %v2180 = vmax.f32 %v2148, 0.0
        %v2181 = vmax.f32 %v2149, 0.0
        %v2182 = vmax.f32 %v2150, 0.0
        %v2183 = vmax.f32 %v2151, 0.0
        %v2184 = vmax.f32 %v2152, 0.0
        %v2185 = vmax.f32 %v2153, 0.0
        %v2186 = vmax.f32 %v2154, 0.0
        %v2187 = vmax.f32 %v2155, 0.0
        %v2188 = vmax.f32 %v2156, 0.0
        %v2189 = vmax.f32 %v2157, 0.0
        %v2190 = vmax.f32 %v2158, 0.0
        %v2191 = vmax.f32 %v2159, 0.0
        %v2192 = vmax.f32 %v2160, 0.0
        %v2193 = vmax.f32 %v2161, 0.0
        %v2194 = vmax.f32 %v2162, 0.0
        %v2195 = vmax.f32 %v2163, 0.0
        %v2196 = vmax.f32 %v2164, 0.0
        %v2197 = vmax.f32 %v2165, 0.0
        %v2198 = vmax.f32 %v2166, 0.0
        %v2199 = vpack.c.bf16 %v2168, %v2167
        %v2200 = vpack.c.bf16 %v2170, %v2169
        %v2201 = vpack.c.bf16 %v2172, %v2171
        %v2202 = vpack.c.bf16 %v2174, %v2173
        %v2203 = vpack.c.bf16 %v2176, %v2175
        %v2204 = vpack.c.bf16 %v2178, %v2177
        %v2205 = vpack.c.bf16 %v2180, %v2179
        %v2206 = vpack.c.bf16 %v2182, %v2181
        %v2207 = vpack.c.bf16 %v2184, %v2183
        %v2208 = vpack.c.bf16 %v2186, %v2185
        %v2209 = vpack.c.bf16 %v2188, %v2187
        %v2210 = vpack.c.bf16 %v2190, %v2189
        %v2211 = vpack.c.bf16 %v2192, %v2191
        %v2212 = vpack.c.bf16 %v2194, %v2193
        %v2213 = vpack.c.bf16 %v2196, %v2195
        %v2214 = vpack.c.bf16 %v2198, %v2197
        %2231 = vrot.lane.b32.xlu0 %v2199, 64
        %v2232 = vpop.permute.xlu0 %2231
        %2233 = vrot.lane.b32.xlu0 %v2200, 64
        %v2234 = vpop.permute.xlu0 %2233
        %2235 = vrot.lane.b32.xlu0 %v2201, 64
        %v2236 = vpop.permute.xlu0 %2235
        %2237 = vrot.lane.b32.xlu0 %v2202, 64
        %v2238 = vpop.permute.xlu0 %2237
        %2239 = vrot.lane.b32.xlu0 %v2203, 64
        %v2240 = vpop.permute.xlu0 %2239
        %2241 = vrot.lane.b32.xlu0 %v2204, 64
        %v2242 = vpop.permute.xlu0 %2241
        %2243 = vrot.lane.b32.xlu0 %v2205, 64
        %v2244 = vpop.permute.xlu0 %2243
        %2245 = vrot.lane.b32.xlu0 %v2206, 64
        %v2246 = vpop.permute.xlu0 %2245
        %2247 = vrot.lane.b32.xlu0 %v2207, 64
        %v2248 = vpop.permute.xlu0 %2247
        %2249 = vrot.lane.b32.xlu0 %v2208, 64
        %v2250 = vpop.permute.xlu0 %2249
        %2251 = vrot.lane.b32.xlu0 %v2209, 64
        %v2252 = vpop.permute.xlu0 %2251
        %2253 = vrot.lane.b32.xlu0 %v2210, 64
        %v2254 = vpop.permute.xlu0 %2253
        %2255 = vrot.lane.b32.xlu0 %v2211, 64
        %v2256 = vpop.permute.xlu0 %2255
        %2257 = vrot.lane.b32.xlu0 %v2212, 64
        %v2258 = vpop.permute.xlu0 %2257
        %2259 = vrot.lane.b32.xlu0 %v2213, 64
        %v2260 = vpop.permute.xlu0 %2259
        %2261 = vrot.lane.b32.xlu0 %v2214, 64
        %v2262 = vpop.permute.xlu0 %2261
        %v2264 = vsel %vm1207, %v897, %v2232
        %v2267 = vsel %vm1207, %v898, %v2234
        %v2270 = vsel %vm1207, %v899, %v2236
        %v2273 = vsel %vm1207, %v900, %v2238
        %v2276 = vsel %vm1207, %v901, %v2240
        %v2279 = vsel %vm1207, %v902, %v2242
        %v2282 = vsel %vm1207, %v903, %v2244
        %v2285 = vsel %vm1207, %v904, %v2246
        %v2288 = vsel %vm1207, %v905, %v2248
        %v2291 = vsel %vm1207, %v906, %v2250
        %v2294 = vsel %vm1207, %v907, %v2252
        %v2297 = vsel %vm1207, %v908, %v2254
        %v2300 = vsel %vm1207, %v909, %v2256
        %v2303 = vsel %vm1207, %v910, %v2258
        %v2306 = vsel %vm1207, %v911, %v2260
        %v2309 = vsel %vm1207, %v912, %v2262
        %v2311 = vld [vmem:[%s10] sm:$0xf]
        %v2312 = vld [vmem:[%s10 + $0x4] sm:$0xf]
        %v2313 = vld [vmem:[%s10 + $0x8] sm:$0xf]
        %v2314 = vld [vmem:[%s10 + $0xc] sm:$0xf]
        %v2315 = vld [vmem:[%s10 + $0x10] sm:$0xf]
        %v2316 = vld [vmem:[%s10 + $0x14] sm:$0xf]
        %v2317 = vld [vmem:[%s10 + $0x18] sm:$0xf]
        %v2318 = vld [vmem:[%s10 + $0x1c] sm:$0xf]
        %v2319 = vld [vmem:[%s10 + $0x20] sm:$0xf]
        %v2320 = vld [vmem:[%s10 + $0x24] sm:$0xf]
        %v2321 = vld [vmem:[%s10 + $0x28] sm:$0xf]
        %v2322 = vld [vmem:[%s10 + $0x2c] sm:$0xf]
        %v2323 = vld [vmem:[%s10 + $0x30] sm:$0xf]
        %v2324 = vld [vmem:[%s10 + $0x34] sm:$0xf]
        %v2325 = vld [vmem:[%s10 + $0x38] sm:$0xf]
        %v2326 = vld [vmem:[%s10 + $0x3c] sm:$0xf]
        %v2343 = vunpack.c.l.b16 %v2311
        %v2344 = vunpack.c.l.b16 %v2312
        %v2345 = vunpack.c.l.b16 %v2313
        %v2346 = vunpack.c.l.b16 %v2314
        %v2347 = vunpack.c.l.b16 %v2315
        %v2348 = vunpack.c.l.b16 %v2316
        %v2349 = vunpack.c.l.b16 %v2317
        %v2350 = vunpack.c.l.b16 %v2318
        %v2351 = vunpack.c.l.b16 %v2319
        %v2352 = vunpack.c.l.b16 %v2320
        %v2353 = vunpack.c.l.b16 %v2321
        %v2354 = vunpack.c.l.b16 %v2322
        %v2355 = vunpack.c.l.b16 %v2323
        %v2356 = vunpack.c.l.b16 %v2324
        %v2357 = vunpack.c.l.b16 %v2325
        %v2358 = vunpack.c.l.b16 %v2326
        %v2359 = vpack.c.b16 %v2344, %v2343
        %v2360 = vpack.c.b16 %v2346, %v2345
        %v2361 = vpack.c.b16 %v2348, %v2347
        %v2362 = vpack.c.b16 %v2350, %v2349
        %v2363 = vpack.c.b16 %v2352, %v2351
        %v2364 = vpack.c.b16 %v2354, %v2353
        %v2365 = vpack.c.b16 %v2356, %v2355
        %v2366 = vpack.c.b16 %v2358, %v2357
        %2375 = vmatprep.subr.bf16.mxu0 0
        %2376 = vmatpush1.bf16.msra.mxu0 %v2359
        %2377 = vmatprep.subr.bf16.mxu0 0
        %2378 = vmatpush1.bf16.msra.mxu0 %v2360
        %2379 = vmatprep.subr.bf16.mxu0 0
        %2380 = vmatpush1.bf16.msra.mxu0 %v2361
        %2381 = vmatprep.subr.bf16.mxu0 0
        %2382 = vmatpush1.bf16.msra.mxu0 %v2362
        %2383 = vmatprep.subr.bf16.mxu0 0
        %2384 = vmatpush1.bf16.msra.mxu0 %v2363
        %2385 = vmatprep.subr.bf16.mxu0 0
        %2386 = vmatpush1.bf16.msra.mxu0 %v2364
        %2387 = vmatprep.subr.bf16.mxu0 0
        %2388 = vmatpush1.bf16.msra.mxu0 %v2365
        %2389 = vmatprep.subr.bf16.mxu0 0
        %2390 = vmatpush1.bf16.msra.mxu0 %v2366
        %2391 = vmatprep.subr.bf16.mxu0 0
        %2392 = vmatpush1.bf16.msra.mxu0 0
        %2393 = vmatprep.subr.bf16.mxu0 0
        %2394 = vmatpush1.bf16.msra.mxu0 0
        %2395 = vmatprep.subr.bf16.mxu0 0
        %2396 = vmatpush1.bf16.msra.mxu0 0
        %2397 = vmatprep.subr.bf16.mxu0 0
        %2398 = vmatpush1.bf16.msra.mxu0 0
        %2399 = vmatprep.subr.bf16.mxu0 0
        %2400 = vmatpush1.bf16.msra.mxu0 0
        %2401 = vmatprep.subr.bf16.mxu0 0
        %2402 = vmatpush1.bf16.msra.mxu0 0
        %2403 = vmatprep.subr.bf16.mxu0 0
        %2404 = vmatpush1.bf16.msra.mxu0 0
        %2405 = vmatprep.subr.bf16.mxu0 0
        %2406 = vmatpush1.bf16.msra.mxu0 0
        %2407 = vmatprep.mubr.bf16.mxu0 0
        %2408 = vmatmul.mubr.bf16.gmra.mrb[0].mxu0 %v2264
        %v2409 = vpop.f32.mrb[0].mxu0
        %v2410 = vadd.f32 0.0, %v2409
        %v2411 = vpop.f32.mrb[0].mxu0
        %v2412 = vpop.f32.mrb[0].mxu0
        %v2413 = vadd.f32 0.0, %v2412
        %v2414 = vpop.f32.mrb[0].mxu0
        %2415 = vmatprep.mubr.bf16.mxu0 0
        %2416 = vmatmul.mubr.bf16.gmra.mrb[0].mxu0 %v2267
        %v2417 = vpop.f32.mrb[0].mxu0
        %v2418 = vadd.f32 0.0, %v2417
        %v2419 = vpop.f32.mrb[0].mxu0
        %v2420 = vpop.f32.mrb[0].mxu0
        %v2421 = vadd.f32 0.0, %v2420
        %v2422 = vpop.f32.mrb[0].mxu0
        %2423 = vmatprep.mubr.bf16.mxu0 0
        %2424 = vmatmul.mubr.bf16.gmra.mrb[0].mxu0 %v2270
        %v2425 = vpop.f32.mrb[0].mxu0
        %v2426 = vadd.f32 0.0, %v2425
        %v2427 = vpop.f32.mrb[0].mxu0
        %v2428 = vpop.f32.mrb[0].mxu0
        %v2429 = vadd.f32 0.0, %v2428
        %v2430 = vpop.f32.mrb[0].mxu0
        %2431 = vmatprep.mubr.bf16.mxu0 0
        %2432 = vmatmul.mubr.bf16.gmra.mrb[0].mxu0 %v2273
        %v2433 = vpop.f32.mrb[0].mxu0
        %v2434 = vadd.f32 0.0, %v2433
        %v2435 = vpop.f32.mrb[0].mxu0
        %v2436 = vpop.f32.mrb[0].mxu0
        %v2437 = vadd.f32 0.0, %v2436
        %v2438 = vpop.f32.mrb[0].mxu0
        %2439 = vmatprep.mubr.bf16.mxu0 0
        %2440 = vmatmul.mubr.bf16.gmra.mrb[0].mxu0 %v2276
        %v2441 = vpop.f32.mrb[0].mxu0
        %v2442 = vadd.f32 0.0, %v2441
        %v2443 = vpop.f32.mrb[0].mxu0
        %v2444 = vpop.f32.mrb[0].mxu0
        %v2445 = vadd.f32 0.0, %v2444
        %v2446 = vpop.f32.mrb[0].mxu0
        %2447 = vmatprep.mubr.bf16.mxu0 0
        %2448 = vmatmul.mubr.bf16.gmra.mrb[0].mxu0 %v2279
        %v2449 = vpop.f32.mrb[0].mxu0
        %v2450 = vadd.f32 0.0, %v2449
        %v2451 = vpop.f32.mrb[0].mxu0
        %v2452 = vpop.f32.mrb[0].mxu0
        %v2453 = vadd.f32 0.0, %v2452
        %v2454 = vpop.f32.mrb[0].mxu0
        %2455 = vmatprep.mubr.bf16.mxu0 0
        %2456 = vmatmul.mubr.bf16.gmra.mrb[0].mxu0 %v2282
        %v2457 = vpop.f32.mrb[0].mxu0
        %v2458 = vadd.f32 0.0, %v2457
        %v2459 = vpop.f32.mrb[0].mxu0
        %v2460 = vpop.f32.mrb[0].mxu0
        %v2461 = vadd.f32 0.0, %v2460
        %v2462 = vpop.f32.mrb[0].mxu0
        %2463 = vmatprep.mubr.bf16.mxu0 0
        %2464 = vmatmul.mubr.bf16.gmra.mrb[0].mxu0 %v2285
        %v2465 = vpop.f32.mrb[0].mxu0
        %v2466 = vadd.f32 0.0, %v2465
        %v2467 = vpop.f32.mrb[0].mxu0
        %v2468 = vpop.f32.mrb[0].mxu0
        %v2469 = vadd.f32 0.0, %v2468
        %v2470 = vpop.f32.mrb[0].mxu0
        %2471 = vmatprep.mubr.bf16.mxu0 0
        %2472 = vmatmul.mubr.bf16.gmra.mrb[0].mxu0 %v2288
        %v2473 = vpop.f32.mrb[0].mxu0
        %v2474 = vadd.f32 0.0, %v2473
        %v2475 = vpop.f32.mrb[0].mxu0
        %v2476 = vpop.f32.mrb[0].mxu0
        %v2477 = vadd.f32 0.0, %v2476
        %v2478 = vpop.f32.mrb[0].mxu0
        %2479 = vmatprep.mubr.bf16.mxu0 0
        %2480 = vmatmul.mubr.bf16.gmra.mrb[0].mxu0 %v2291
        %v2481 = vpop.f32.mrb[0].mxu0
        %v2482 = vadd.f32 0.0, %v2481
        %v2483 = vpop.f32.mrb[0].mxu0
        %v2484 = vpop.f32.mrb[0].mxu0
        %v2485 = vadd.f32 0.0, %v2484
        %v2486 = vpop.f32.mrb[0].mxu0
        %2487 = vmatprep.mubr.bf16.mxu0 0
        %2488 = vmatmul.mubr.bf16.gmra.mrb[0].mxu0 %v2294
        %v2489 = vpop.f32.mrb[0].mxu0
        %v2490 = vadd.f32 0.0, %v2489
        %v2491 = vpop.f32.mrb[0].mxu0
        %v2492 = vpop.f32.mrb[0].mxu0
        %v2493 = vadd.f32 0.0, %v2492
        %v2494 = vpop.f32.mrb[0].mxu0
        %2495 = vmatprep.mubr.bf16.mxu0 0
        %2496 = vmatmul.mubr.bf16.gmra.mrb[0].mxu0 %v2297
        %v2497 = vpop.f32.mrb[0].mxu0
        %v2498 = vadd.f32 0.0, %v2497
        %v2499 = vpop.f32.mrb[0].mxu0
        %v2500 = vpop.f32.mrb[0].mxu0
        %v2501 = vadd.f32 0.0, %v2500
        %v2502 = vpop.f32.mrb[0].mxu0
        %2503 = vmatprep.mubr.bf16.mxu0 0
        %2504 = vmatmul.mubr.bf16.gmra.mrb[0].mxu0 %v2300
        %v2505 = vpop.f32.mrb[0].mxu0
        %v2506 = vadd.f32 0.0, %v2505
        %v2507 = vpop.f32.mrb[0].mxu0
        %v2508 = vpop.f32.mrb[0].mxu0
        %v2509 = vadd.f32 0.0, %v2508
        %v2510 = vpop.f32.mrb[0].mxu0
        %2511 = vmatprep.mubr.bf16.mxu0 0
        %2512 = vmatmul.mubr.bf16.gmra.mrb[0].mxu0 %v2303
        %v2513 = vpop.f32.mrb[0].mxu0
        %v2514 = vadd.f32 0.0, %v2513
        %v2515 = vpop.f32.mrb[0].mxu0
        %v2516 = vpop.f32.mrb[0].mxu0
        %v2517 = vadd.f32 0.0, %v2516
        %v2518 = vpop.f32.mrb[0].mxu0
        %2519 = vmatprep.mubr.bf16.mxu0 0
        %2520 = vmatmul.mubr.bf16.gmra.mrb[0].mxu0 %v2306
        %v2521 = vpop.f32.mrb[0].mxu0
        %v2522 = vadd.f32 0.0, %v2521
        %v2523 = vpop.f32.mrb[0].mxu0
        %v2524 = vpop.f32.mrb[0].mxu0
        %v2525 = vadd.f32 0.0, %v2524
        %v2526 = vpop.f32.mrb[0].mxu0
        %2527 = vmatprep.mubr.bf16.mxu0 0
        %2528 = vmatmul.mubr.bf16.gmra.mrb[0].mxu0 %v2309
        %v2529 = vpop.f32.mrb[0].mxu0
        %v2530 = vadd.f32 0.0, %v2529
        %v2531 = vpop.f32.mrb[0].mxu0
        %v2532 = vpop.f32.mrb[0].mxu0
        %v2533 = vadd.f32 0.0, %v2532
        %v2534 = vpop.f32.mrb[0].mxu0
        %2535 = vdwg.mxu0
        %v2536 = vld [vmem:[%s11] sm:$0x1]
        %v2538 = vlaneseq
        %v2539 = vshrl.u32 %v2538, 7
        %v2540 = vsub.s32 0, %v2539
        %v2541 = vrot.slane %v2536, %v2540
        %v2543 = vmul.f32 %v2410, %v2541
        %v2544 = vmul.f32 %v2413, %v2541
        %v2545 = vmul.f32 %v2418, %v2541
        %v2546 = vmul.f32 %v2421, %v2541
        %v2547 = vmul.f32 %v2426, %v2541
        %v2548 = vmul.f32 %v2429, %v2541
        %v2549 = vmul.f32 %v2434, %v2541
        %v2550 = vmul.f32 %v2437, %v2541
        %v2551 = vmul.f32 %v2442, %v2541
        %v2552 = vmul.f32 %v2445, %v2541
        %v2553 = vmul.f32 %v2450, %v2541
        %v2554 = vmul.f32 %v2453, %v2541
        %v2555 = vmul.f32 %v2458, %v2541
        %v2556 = vmul.f32 %v2461, %v2541
        %v2557 = vmul.f32 %v2466, %v2541
        %v2558 = vmul.f32 %v2469, %v2541
        %v2559 = vmul.f32 %v2474, %v2541
        %v2560 = vmul.f32 %v2477, %v2541
        %v2561 = vmul.f32 %v2482, %v2541
        %v2562 = vmul.f32 %v2485, %v2541
        %v2563 = vmul.f32 %v2490, %v2541
        %v2564 = vmul.f32 %v2493, %v2541
        %v2565 = vmul.f32 %v2498, %v2541
        %v2566 = vmul.f32 %v2501, %v2541
        %v2567 = vmul.f32 %v2506, %v2541
        %v2568 = vmul.f32 %v2509, %v2541
        %v2569 = vmul.f32 %v2514, %v2541
        %v2570 = vmul.f32 %v2517, %v2541
        %v2571 = vmul.f32 %v2522, %v2541
        %v2572 = vmul.f32 %v2525, %v2541
        %v2573 = vmul.f32 %v2530, %v2541
        %v2574 = vmul.f32 %v2533, %v2541
        %v2575 = vld [vmem:[%s12] sm:$0x1]
        %v2577 = vlaneseq
        %v2578 = vshrl.u32 %v2577, 7
        %v2579 = vsub.s32 0, %v2578
        %v2580 = vrot.slane %v2575, %v2579
        %v2582 = vadd.f32 %v2543, %v2580
        %v2583 = vadd.f32 %v2544, %v2580
        %v2584 = vadd.f32 %v2545, %v2580
        %v2585 = vadd.f32 %v2546, %v2580
        %v2586 = vadd.f32 %v2547, %v2580
        %v2587 = vadd.f32 %v2548, %v2580
        %v2588 = vadd.f32 %v2549, %v2580
        %v2589 = vadd.f32 %v2550, %v2580
        %v2590 = vadd.f32 %v2551, %v2580
        %v2591 = vadd.f32 %v2552, %v2580
        %v2592 = vadd.f32 %v2553, %v2580
        %v2593 = vadd.f32 %v2554, %v2580
        %v2594 = vadd.f32 %v2555, %v2580
        %v2595 = vadd.f32 %v2556, %v2580
        %v2596 = vadd.f32 %v2557, %v2580
        %v2597 = vadd.f32 %v2558, %v2580
        %v2598 = vadd.f32 %v2559, %v2580
        %v2599 = vadd.f32 %v2560, %v2580
        %v2600 = vadd.f32 %v2561, %v2580
        %v2601 = vadd.f32 %v2562, %v2580
        %v2602 = vadd.f32 %v2563, %v2580
        %v2603 = vadd.f32 %v2564, %v2580
        %v2604 = vadd.f32 %v2565, %v2580
        %v2605 = vadd.f32 %v2566, %v2580
        %v2606 = vadd.f32 %v2567, %v2580
        %v2607 = vadd.f32 %v2568, %v2580
        %v2608 = vadd.f32 %v2569, %v2580
        %v2609 = vadd.f32 %v2570, %v2580
        %v2610 = vadd.f32 %v2571, %v2580
        %v2611 = vadd.f32 %v2572, %v2580
        %v2612 = vadd.f32 %v2573, %v2580
        %v2613 = vadd.f32 %v2574, %v2580
        %v2614 = vadd.f32 %v2582, %v2583
        %v2615 = vadd.f32 %v2614, %v2584
        %v2616 = vadd.f32 %v2615, %v2585
        %v2617 = vadd.f32 %v2616, %v2586
        %v2618 = vadd.f32 %v2617, %v2587
        %v2619 = vadd.f32 %v2618, %v2588
        %v2620 = vadd.f32 %v2619, %v2589
        %v2621 = vadd.f32 %v2620, %v2590
        %v2622 = vadd.f32 %v2621, %v2591
        %v2623 = vadd.f32 %v2622, %v2592
        %v2624 = vadd.f32 %v2623, %v2593
        %v2625 = vadd.f32 %v2624, %v2594
        %v2626 = vadd.f32 %v2625, %v2595
        %v2627 = vadd.f32 %v2626, %v2596
        %v2628 = vadd.f32 %v2627, %v2597
        %v2629 = vadd.f32 %v2628, %v2598
        %v2630 = vadd.f32 %v2629, %v2599
        %v2631 = vadd.f32 %v2630, %v2600
        %v2632 = vadd.f32 %v2631, %v2601
        %v2633 = vadd.f32 %v2632, %v2602
        %v2634 = vadd.f32 %v2633, %v2603
        %v2635 = vadd.f32 %v2634, %v2604
        %v2636 = vadd.f32 %v2635, %v2605
        %v2637 = vadd.f32 %v2636, %v2606
        %v2638 = vadd.f32 %v2637, %v2607
        %v2639 = vadd.f32 %v2638, %v2608
        %v2640 = vadd.f32 %v2639, %v2609
        %v2641 = vadd.f32 %v2640, %v2610
        %v2642 = vadd.f32 %v2641, %v2611
        %v2643 = vadd.f32 %v2642, %v2612
        %v2644 = vadd.f32 %v2643, %v2613
        %v2645 = vrot.slane %v2644, 4
        %v2646 = vadd.f32 %v2644, %v2645
        %v2647 = vrot.slane %v2646, 2
        %v2648 = vadd.f32 %v2646, %v2647
        %v2649 = vrot.slane %v2648, 1
        %v2650 = vadd.f32 %v2648, %v2649
        %v2651 = vrcp.pop 256.0
        %v2652 = vmul.f32 %v2650, %v2651
        %v2653 = vpack.c.bf16 %v2652, %v2652
        %v2654 = vld [vmem:[%s13] sm:$0xf]
        %v2655 = vld [vmem:[%s13 + $0x4] sm:$0xf]
        %v2656 = vld [vmem:[%s13 + $0x8] sm:$0xf]
        %v2657 = vld [vmem:[%s13 + $0xc] sm:$0xf]
        %v2658 = vld [vmem:[%s13 + $0x10] sm:$0xf]
        %v2659 = vld [vmem:[%s13 + $0x14] sm:$0xf]
        %v2660 = vld [vmem:[%s13 + $0x18] sm:$0xf]
        %v2661 = vld [vmem:[%s13 + $0x1c] sm:$0xf]
        %v2662 = vld [vmem:[%s13 + $0x20] sm:$0xf]
        %v2663 = vld [vmem:[%s13 + $0x24] sm:$0xf]
        %v2664 = vld [vmem:[%s13 + $0x28] sm:$0xf]
        %v2665 = vld [vmem:[%s13 + $0x2c] sm:$0xf]
        %v2666 = vld [vmem:[%s13 + $0x30] sm:$0xf]
        %v2667 = vld [vmem:[%s13 + $0x34] sm:$0xf]
        %v2668 = vld [vmem:[%s13 + $0x38] sm:$0xf]
        %v2669 = vld [vmem:[%s13 + $0x3c] sm:$0xf]
        %v2686 = vunpack.c.l.b16 %v2654
        %v2687 = vunpack.c.l.b16 %v2655
        %v2688 = vunpack.c.l.b16 %v2656
        %v2689 = vunpack.c.l.b16 %v2657
        %v2690 = vunpack.c.l.b16 %v2658
        %v2691 = vunpack.c.l.b16 %v2659
        %v2692 = vunpack.c.l.b16 %v2660
        %v2693 = vunpack.c.l.b16 %v2661
        %v2694 = vunpack.c.l.b16 %v2662
        %v2695 = vunpack.c.l.b16 %v2663
        %v2696 = vunpack.c.l.b16 %v2664
        %v2697 = vunpack.c.l.b16 %v2665
        %v2698 = vunpack.c.l.b16 %v2666
        %v2699 = vunpack.c.l.b16 %v2667
        %v2700 = vunpack.c.l.b16 %v2668
        %v2701 = vunpack.c.l.b16 %v2669
        %v2702 = vpack.c.b16 %v2687, %v2686
        %v2703 = vpack.c.b16 %v2689, %v2688
        %v2704 = vpack.c.b16 %v2691, %v2690
        %v2705 = vpack.c.b16 %v2693, %v2692
        %v2706 = vpack.c.b16 %v2695, %v2694
        %v2707 = vpack.c.b16 %v2697, %v2696
        %v2708 = vpack.c.b16 %v2699, %v2698
        %v2709 = vpack.c.b16 %v2701, %v2700
        %2718 = vmatprep.subr.bf16.mxu0 0
        %2719 = vmatpush1.bf16.msra.mxu0 %v2702
        %2720 = vmatprep.subr.bf16.mxu0 0
        %2721 = vmatpush1.bf16.msra.mxu0 %v2703
        %2722 = vmatprep.subr.bf16.mxu0 0
        %2723 = vmatpush1.bf16.msra.mxu0 %v2704
        %2724 = vmatprep.subr.bf16.mxu0 0
        %2725 = vmatpush1.bf16.msra.mxu0 %v2705
        %2726 = vmatprep.subr.bf16.mxu0 0
        %2727 = vmatpush1.bf16.msra.mxu0 %v2706
        %2728 = vmatprep.subr.bf16.mxu0 0
        %2729 = vmatpush1.bf16.msra.mxu0 %v2707
        %2730 = vmatprep.subr.bf16.mxu0 0
        %2731 = vmatpush1.bf16.msra.mxu0 %v2708
        %2732 = vmatprep.subr.bf16.mxu0 0
        %2733 = vmatpush1.bf16.msra.mxu0 %v2709
        %2734 = vmatprep.subr.bf16.mxu0 0
        %2735 = vmatpush1.bf16.msra.mxu0 0
        %2736 = vmatprep.subr.bf16.mxu0 0
        %2737 = vmatpush1.bf16.msra.mxu0 0
        %2738 = vmatprep.subr.bf16.mxu0 0
        %2739 = vmatpush1.bf16.msra.mxu0 0
        %2740 = vmatprep.subr.bf16.mxu0 0
        %2741 = vmatpush1.bf16.msra.mxu0 0
        %2742 = vmatprep.subr.bf16.mxu0 0
        %2743 = vmatpush1.bf16.msra.mxu0 0
        %2744 = vmatprep.subr.bf16.mxu0 0
        %2745 = vmatpush1.bf16.msra.mxu0 0
        %2746 = vmatprep.subr.bf16.mxu0 0
        %2747 = vmatpush1.bf16.msra.mxu0 0
        %2748 = vmatprep.subr.bf16.mxu0 0
        %2749 = vmatpush1.bf16.msra.mxu0 0
        %2750 = vmatprep.mubr.bf16.mxu0 0
        %2751 = vmatmul.mubr.bf16.gmra.mrb[0].mxu0 %v2653
        %v2752 = vpop.f32.mrb[0].mxu0
        %v2753 = vadd.f32 0.0, %v2752
        %v2754 = vpop.f32.mrb[0].mxu0
        %v2755 = vpop.f32.mrb[0].mxu0
        %v2756 = vpop.f32.mrb[0].mxu0
        %2757 = vdwg.mxu0
        %v2758 = vmax.f32 %v2753, 0.0
        %v2759 = vpack.c.bf16 %v2758, %v2758
        %v2760 = vld [vmem:[%s14] sm:$0xf]
        %vm2761 = vcmask 64512
        %v2763 = vsel %vm2761, %v2759, 0
        %vm2765 = vcmask 1043456
        %v2767 = vsel %vm2765, %v2760, 0
        %2769 = vmatprep.subr.bf16.mxu0 0
        %2770 = vmatpush1.bf16.msra.mxu0 %v2767
        %2771 = vmatprep.subr.bf16.mxu0 0
        %2772 = vmatpush1.bf16.msra.mxu0 0
        %2773 = vmatprep.subr.bf16.mxu0 0
        %2774 = vmatpush1.bf16.msra.mxu0 0
        %2775 = vmatprep.subr.bf16.mxu0 0
        %2776 = vmatpush1.bf16.msra.mxu0 0
        %2777 = vmatprep.subr.bf16.mxu0 0
        %2778 = vmatpush1.bf16.msra.mxu0 0
        %2779 = vmatprep.subr.bf16.mxu0 0
        %2780 = vmatpush1.bf16.msra.mxu0 0
        %2781 = vmatprep.subr.bf16.mxu0 0
        %2782 = vmatpush1.bf16.msra.mxu0 0
        %2783 = vmatprep.subr.bf16.mxu0 0
        %2784 = vmatpush1.bf16.msra.mxu0 0
        %2785 = vmatprep.subr.bf16.mxu0 0
        %2786 = vmatpush1.bf16.msra.mxu0 0
        %2787 = vmatprep.subr.bf16.mxu0 0
        %2788 = vmatpush1.bf16.msra.mxu0 0
        %2789 = vmatprep.subr.bf16.mxu0 0
        %2790 = vmatpush1.bf16.msra.mxu0 0
        %2791 = vmatprep.subr.bf16.mxu0 0
        %2792 = vmatpush1.bf16.msra.mxu0 0
        %2793 = vmatprep.subr.bf16.mxu0 0
        %2794 = vmatpush1.bf16.msra.mxu0 0
        %2795 = vmatprep.subr.bf16.mxu0 0
        %2796 = vmatpush1.bf16.msra.mxu0 0
        %2797 = vmatprep.subr.bf16.mxu0 0
        %2798 = vmatpush1.bf16.msra.mxu0 0
        %2799 = vmatprep.subr.bf16.mxu0 0
        %2800 = vmatpush1.bf16.msra.mxu0 0
        %2801 = vmatprep.mubr.bf16.mxu0 0
        %2802 = vmatmul.mubr.bf16.gmra.mrb[0].mxu0 %v2763
        %v2803 = vpop.f32.mrb[0].mxu0
        %v2804 = vadd.f32 0.0, %v2803
        %v2805 = vpop.f32.mrb[0].mxu0
        %v2806 = vpop.f32.mrb[0].mxu0
        %v2807 = vpop.f32.mrb[0].mxu0
        %2808 = vdwg.mxu0
        %v2809 = vsub.f32 0.0, %v2804
        %v2810 = vmul.f32 %v2809, 1.442695
        %v2811 = vpow.pop %v2810
        %v2812 = vadd.f32 %v2811, 1.0
        %v2813 = vrcp.pop %v2812
        %v2814 = vmul.f32 1.0, %v2813
        %v2815 = vlaneseq
        %v2816 = vshrl.u32 %v2815, 7
        %v2817 = vsub.s32 0, %v2816
        %v2818 = vrot.slane %v2814, %v2817
        %v2819 = vmul.f32 %v2582, %v2818
        %v2820 = vmul.f32 %v2583, %v2818
        %v2821 = vmul.f32 %v2584, %v2818
        %v2822 = vmul.f32 %v2585, %v2818
        %v2823 = vmul.f32 %v2586, %v2818
        %v2824 = vmul.f32 %v2587, %v2818
        %v2825 = vmul.f32 %v2588, %v2818
        %v2826 = vmul.f32 %v2589, %v2818
        %v2827 = vmul.f32 %v2590, %v2818
        %v2828 = vmul.f32 %v2591, %v2818
        %v2829 = vmul.f32 %v2592, %v2818
        %v2830 = vmul.f32 %v2593, %v2818
        %v2831 = vmul.f32 %v2594, %v2818
        %v2832 = vmul.f32 %v2595, %v2818
        %v2833 = vmul.f32 %v2596, %v2818
        %v2834 = vmul.f32 %v2597, %v2818
        %v2835 = vmul.f32 %v2598, %v2818
        %v2836 = vmul.f32 %v2599, %v2818
        %v2837 = vmul.f32 %v2600, %v2818
        %v2838 = vmul.f32 %v2601, %v2818
        %v2839 = vmul.f32 %v2602, %v2818
        %v2840 = vmul.f32 %v2603, %v2818
        %v2841 = vmul.f32 %v2604, %v2818
        %v2842 = vmul.f32 %v2605, %v2818
        %v2843 = vmul.f32 %v2606, %v2818
        %v2844 = vmul.f32 %v2607, %v2818
        %v2845 = vmul.f32 %v2608, %v2818
        %v2846 = vmul.f32 %v2609, %v2818
        %v2847 = vmul.f32 %v2610, %v2818
        %v2848 = vmul.f32 %v2611, %v2818
        %v2849 = vmul.f32 %v2612, %v2818
        %v2850 = vmul.f32 %v2613, %v2818
        %v2851 = vadd.f32 %v2819, %v514
        %v2852 = vadd.f32 %v2820, %v515
        %v2853 = vadd.f32 %v2821, %v516
        %v2854 = vadd.f32 %v2822, %v517
        %v2855 = vadd.f32 %v2823, %v518
        %v2856 = vadd.f32 %v2824, %v519
        %v2857 = vadd.f32 %v2825, %v520
        %v2858 = vadd.f32 %v2826, %v521
        %v2859 = vadd.f32 %v2827, %v522
        %v2860 = vadd.f32 %v2828, %v523
        %v2861 = vadd.f32 %v2829, %v524
        %v2862 = vadd.f32 %v2830, %v525
        %v2863 = vadd.f32 %v2831, %v526
        %v2864 = vadd.f32 %v2832, %v527
        %v2865 = vadd.f32 %v2833, %v528
        %v2866 = vadd.f32 %v2834, %v529
        %v2867 = vadd.f32 %v2835, %v530
        %v2868 = vadd.f32 %v2836, %v531
        %v2869 = vadd.f32 %v2837, %v532
        %v2870 = vadd.f32 %v2838, %v533
        %v2871 = vadd.f32 %v2839, %v534
        %v2872 = vadd.f32 %v2840, %v535
        %v2873 = vadd.f32 %v2841, %v536
        %v2874 = vadd.f32 %v2842, %v537
        %v2875 = vadd.f32 %v2843, %v538
        %v2876 = vadd.f32 %v2844, %v539
        %v2877 = vadd.f32 %v2845, %v540
        %v2878 = vadd.f32 %v2846, %v541
        %v2879 = vadd.f32 %v2847, %v542
        %v2880 = vadd.f32 %v2848, %v543
        %v2881 = vadd.f32 %v2849, %v544
        %v2882 = vadd.f32 %v2850, %v545
        %v2883 = vmax.f32 %v2851, 0.0
        %v2884 = vmax.f32 %v2852, 0.0
        %v2885 = vmax.f32 %v2853, 0.0
        %v2886 = vmax.f32 %v2854, 0.0
        %v2887 = vmax.f32 %v2855, 0.0
        %v2888 = vmax.f32 %v2856, 0.0
        %v2889 = vmax.f32 %v2857, 0.0
        %v2890 = vmax.f32 %v2858, 0.0
        %v2891 = vmax.f32 %v2859, 0.0
        %v2892 = vmax.f32 %v2860, 0.0
        %v2893 = vmax.f32 %v2861, 0.0
        %v2894 = vmax.f32 %v2862, 0.0
        %v2895 = vmax.f32 %v2863, 0.0
        %v2896 = vmax.f32 %v2864, 0.0
        %v2897 = vmax.f32 %v2865, 0.0
        %v2898 = vmax.f32 %v2866, 0.0
        %v2899 = vmax.f32 %v2867, 0.0
        %v2900 = vmax.f32 %v2868, 0.0
        %v2901 = vmax.f32 %v2869, 0.0
        %v2902 = vmax.f32 %v2870, 0.0
        %v2903 = vmax.f32 %v2871, 0.0
        %v2904 = vmax.f32 %v2872, 0.0
        %v2905 = vmax.f32 %v2873, 0.0
        %v2906 = vmax.f32 %v2874, 0.0
        %v2907 = vmax.f32 %v2875, 0.0
        %v2908 = vmax.f32 %v2876, 0.0
        %v2909 = vmax.f32 %v2877, 0.0
        %v2910 = vmax.f32 %v2878, 0.0
        %v2911 = vmax.f32 %v2879, 0.0
        %v2912 = vmax.f32 %v2880, 0.0
        %v2913 = vmax.f32 %v2881, 0.0
        %v2914 = vmax.f32 %v2882, 0.0
        %2915 = vst [vmem:[%s512] sm:$0xff] %v2883
        %2916 = vst [vmem:[%s512 + $0x8] sm:$0xff] %v2884
        %2917 = vst [vmem:[%s512 + $0x10] sm:$0xff] %v2885
        %2918 = vst [vmem:[%s512 + $0x18] sm:$0xff] %v2886
        %2919 = vst [vmem:[%s512 + $0x20] sm:$0xff] %v2887
        %2920 = vst [vmem:[%s512 + $0x28] sm:$0xff] %v2888
        %2921 = vst [vmem:[%s512 + $0x30] sm:$0xff] %v2889
        %2922 = vst [vmem:[%s512 + $0x38] sm:$0xff] %v2890
        %2923 = vst [vmem:[%s512 + $0x40] sm:$0xff] %v2891
        %2924 = vst [vmem:[%s512 + $0x48] sm:$0xff] %v2892
        %2925 = vst [vmem:[%s512 + $0x50] sm:$0xff] %v2893
        %2926 = vst [vmem:[%s512 + $0x58] sm:$0xff] %v2894
        %2927 = vst [vmem:[%s512 + $0x60] sm:$0xff] %v2895
        %2928 = vst [vmem:[%s512 + $0x68] sm:$0xff] %v2896
        %2929 = vst [vmem:[%s512 + $0x70] sm:$0xff] %v2897
        %2930 = vst [vmem:[%s512 + $0x78] sm:$0xff] %v2898
        %2931 = vst [vmem:[%s512 + $0x80] sm:$0xff] %v2899
        %2932 = vst [vmem:[%s512 + $0x88] sm:$0xff] %v2900
        %2933 = vst [vmem:[%s512 + $0x90] sm:$0xff] %v2901
        %2934 = vst [vmem:[%s512 + $0x98] sm:$0xff] %v2902
        %2935 = vst [vmem:[%s512 + $0xa0] sm:$0xff] %v2903
        %2936 = vst [vmem:[%s512 + $0xa8] sm:$0xff] %v2904
        %2937 = vst [vmem:[%s512 + $0xb0] sm:$0xff] %v2905
        %2938 = vst [vmem:[%s512 + $0xb8] sm:$0xff] %v2906
        %2939 = vst [vmem:[%s512 + $0xc0] sm:$0xff] %v2907
        %2940 = vst [vmem:[%s512 + $0xc8] sm:$0xff] %v2908
        %2941 = vst [vmem:[%s512 + $0xd0] sm:$0xff] %v2909
        %2942 = vst [vmem:[%s512 + $0xd8] sm:$0xff] %v2910
        %2943 = vst [vmem:[%s512 + $0xe0] sm:$0xff] %v2911
        %2944 = vst [vmem:[%s512 + $0xe8] sm:$0xff] %v2912
        %2945 = vst [vmem:[%s512 + $0xf0] sm:$0xff] %v2913
        %2946 = vst [vmem:[%s512 + $0xf8] sm:$0xff] %v2914
        %s2947 = sand.u32 %s360, 1
        %s2948 = scalar_lea.sflag [#allocation4], %s2947
        %s2949 = sand.u32 %s360, 1
        %s2950 = smul.addr %s2949, 256
        %s2951 = scalar_lea.vmem [#allocation5], %s2950
        // Predicated region
        $region85: #{tpu_custom_call.1} parent=79 // pred_check
          %p2952 = pneg %p370
        $region86: #{tpu_custom_call.1} parent=79 // pred_check_branch
          %2954 = sbr.rel (%p2952) target = $region88
        $region87: #{tpu_custom_call.1} parent=79 // pred_region
          %s2956 = ssub.s32 4096, 4096
          %2957 = vsyncadd %s2948, %s2956
          %s2958 = smul.addr %s32, 32
          %s2959 = smul.addr %s2958, 128
          %s2960 = scalar_lea.hbm %s15, %s2959
          %s2961 = sshll.u32 %s2951, 4
          %s2962 = int_to_ptr.vmem [resolvable:$true] %s2961
          %2967 = dma.vmem_to_hbm [thread:$0]  %s2962, 4096, %s2960, %s2948, 128, 128, 8
        $region88: #{tpu_custom_call.1} parent=79 // pred_fallthru
          _
      $region80: #{tpu_custom_call.1} parent=5 // pred_fallthru
        _
      %p2968 = scmp.le.s32.totalorder 2, %s27
      // Predicated region
      $region89: #{tpu_custom_call.1} parent=5 // pred_check
        %p2969 = pneg %p2968
      $region90: #{tpu_custom_call.1} parent=5 // pred_check_branch
        %2971 = sbr.rel (%p2969) target = $region92
      $region91: #{tpu_custom_call.1} parent=5 // pred_region
        %s2972 = ssub.s32 %s27, 2
        // Predicated region
        $region93: #{tpu_custom_call.1} parent=91 // pred_check
          %p2973 = pneg %p376
        $region94: #{tpu_custom_call.1} parent=91 // pred_check_branch
          %2975 = sbr.rel (%p2973) target = $region96
        $region95: #{tpu_custom_call.1} parent=91 // pred_region
          %s2976 = sand.u32 %s361, 1
          %s2977 = scalar_lea.sflag [#allocation4], %s2976
          %s2978 = sand.u32 %s361, 1
          %s2979 = smul.addr %s2978, 256
          %s2980 = scalar_lea.vmem [#allocation5], %s2979
          %2981 = dma.done %s2977, 4096
        $region96: #{tpu_custom_call.1} parent=91 // pred_fallthru
          _
      $region92: #{tpu_custom_call.1} parent=5 // pred_fallthru
        _
    $region6: #{tpu_custom_call.1} parent=1 // loop_footer
      %s31 = sadd.s32 1, %s27
    $region7: #{tpu_custom_call.1} parent=1 // loop_footer_branch
      %26 = sbr.rel target = $region3
    $region8: #{tpu_custom_call.1} parent=1 // loop_exit
      _
    %2982 = vsyncpa [#allocation3], 1
    %s2983 = scalar_lea.sflag [#allocation3], 1
    %2984 = vsyncpa %s2983, 1
    %2985 = vsyncpa [#allocation4], 1
    %s2986 = scalar_lea.sflag [#allocation4], 1
    %2987 = vsyncpa %s2986, 1

</llo_original>
